<compile_context>
chip_gen: v7x
topology: tpu7x:2x2x1
jax: 0.10.0
libtpu: 0.0.40
codegen_flags: <defaults>
</compile_context>

<pallas_src>
import jax
import jax.numpy as jnp
from jax.experimental import pallas as pl
from jax.experimental.pallas import tpu as pltpu

# ---------------- model hyper-parameters (small, deterministic) -------------
INPUT_SIZE = 16      # stock feature dim (LSTM input = 2 * INPUT_SIZE)
HIDDEN = 32
NUM_LAYERS = 2
NUM_CLASSES = 3
SENTI_DIM = 384
BATCH = 2
SEQ = 8
BN_EPS = 1e-5
OUT_PAD = 128        # lane-dense kernel output width (real logits in [:, :C])


# -----------------------------------------------------------------------------
# pltpu.roll direction self-check, run in interpret mode (no TPU compile).
# If the interpreter probe is unavailable, assume the documented jnp.roll
# semantics; the end-to-end reference assert below still guards alignment.
# -----------------------------------------------------------------------------
def _roll_matches_jnp_roll():
    x = jnp.broadcast_to(jnp.arange(128, dtype=jnp.float32)[None, :], (8, 128))

    def probe(x_ref, o_ref):
        o_ref[...] = pltpu.roll(x_ref[...], 1, axis=1)

    vmem = pl.BlockSpec(memory_space=pltpu.MemorySpace.VMEM)
    try:
        with pltpu.force_tpu_interpret_mode():
            out = pl.pallas_call(
                probe,
                out_shape=jax.ShapeDtypeStruct((8, 128), jnp.float32),
                in_specs=[vmem],
                out_specs=vmem,
            )(x)
        return bool(jnp.array_equal(out, jnp.roll(x, 1, axis=1)))
    except Exception:
        return True


# -----------------------------------------------------------------------------
# Kernel (specialized to NUM_LAYERS == 2, wavefront schedule)
# -----------------------------------------------------------------------------
def make_kernel(B, T, H, shift_g, shift_f, shift_o):
    """Gate layout along lanes (PyTorch order): [ i | f | g | o ], 4H = 128.

    h/c state is carried as (B, 4H); the true state lives in lanes [0:H], the
    remaining lanes hold bounded garbage (|h| <= 1, |c| <= ~T) that is killed
    exactly by the zero rows of the padded recurrent weights.
    The g-gate columns of all gate weights/biases were pre-scaled by 2, so
    2*sigmoid(gates) - 1 equals tanh of the un-scaled preactivation on the g
    lanes (the only lanes of `th` that are consumed).
    """
    G = 4 * H

    def lstm_cell(gates, c_full):
        sig = jax.nn.sigmoid(gates)                           # one EUP pass
        th = 2.0 * sig - 1.0                                  # VPU; == tanh on g lanes
        ig = sig * pltpu.roll(th, shift_g, axis=1)            # lanes 0:H = sig(i)*tanh(g)
        fc = pltpu.roll(sig, shift_f, axis=1) * c_full        # lanes 0:H = sig(f)*c
        c_new = ig + fc                                       # lanes 0:H = new cell state
        h_new = pltpu.roll(sig, shift_o, axis=1) * jnp.tanh(c_new)  # lanes 0:H = h
        return h_new, c_new                                   # other lanes: finite garbage

    def kernel(xcat_ref, w_in0_ref, b0_ref, w_blk_ref, b1s_ref,
               w1_ref, b1_ref, w2_ref, b2_ref, out_ref):
        # ---- hoisted layer-0 input projection: all timesteps in one matmul.
        # senti Linear + concat + W_ih0 + both layer-0 biases were folded into
        # (w_in0, b0) in the wrapper; K is zero-padded to 512.
        gx0 = (jnp.dot(xcat_ref[...], w_in0_ref[...],
                       preferred_element_type=jnp.float32) + b0_ref[...])   # (T*B, G)

        zeros = jnp.zeros((B, G), jnp.float32)

        # ---- wavefront step 0: only layer-0 at t=0 (h0 = c0 = 0 -> no dot).
        h0, c0 = lstm_cell(gx0[0:B, :], zeros)
        h1, c1 = zeros, zeros

        # ---- wavefront steps 1..T-1: layer-0(t=s) and layer-1(t=s-1) from a
        # single merged 256-wide dot.  LHS = [h0 | h1]; RHS = block matrix
        # [[W_hh0 | W_ih1],[0 | W_hh1]] (dereferenced at use site).
        # T is tiny (8) -> static unroll; use lax.fori_loop if T grows > ~16.
        for s in range(1, T):
            hcat = jnp.concatenate([h0, h1], axis=1)                         # (B, 2G)
            gg = jnp.dot(hcat, w_blk_ref[...],
                         preferred_element_type=jnp.float32)                 # (B, 2G)
            gates0 = gg[:, :G] + gx0[s * B:(s + 1) * B, :]
            gates1 = gg[:, G:] + b1s_ref[...]
            h0, c0 = lstm_cell(gates0, c0)        # layer-0 at t = s
            h1, c1 = lstm_cell(gates1, c1)        # layer-1 at t = s-1

        # ---- wavefront step T: only layer-1 at t = T-1 (right block column).
        hcat = jnp.concatenate([h0, h1], axis=1)
        gates1 = (jnp.dot(hcat, w_blk_ref[:, G:],
                          preferred_element_type=jnp.float32) + b1s_ref[...])
        h1, c1 = lstm_cell(gates1, c1)

        # ---- head on the last timestep of the top layer.  All params are
        # lane-padded; fc1's zero rows annihilate the h1 garbage lanes.
        # TODO(synk): nn.Dropout is identity in eval mode; train-mode RNG dropout not implemented.
        y = jnp.dot(h1, w1_ref[...], preferred_element_type=jnp.float32) + b1_ref[...]
        y = jnp.maximum(y, 0.0)                               # ReLU
        # eval-mode BatchNorm was folded into (w2, b2) in the wrapper.
        y = jnp.dot(y, w2_ref[...], preferred_element_type=jnp.float32) + b2_ref[...]
        out_ref[...] = y                                      # (B, 128) lane-dense store

    return kernel


# -----------------------------------------------------------------------------
# Wrapper: weight folding / padding + pallas_call
# -----------------------------------------------------------------------------
def _prep_inputs(x_stock, x_senti, params, H, I):
    B, T, _ = x_stock.shape
    G = 4 * H
    S = x_senti.shape[-1]
    KPAD = ((I + S + 127) // 128) * 128          # 400 -> 512: aligned (8,128) tiles

    w_s, b_s = params[0], params[1]
    w_ih0, w_hh0, b_ih0, b_hh0 = params[2:6]
    w_ih1, w_hh1, b_ih1, b_hh1 = params[6:10]
    w1, b1, gamma, beta, rmean, rvar, w2, b2 = params[10:18]

    zrows = lambda w, n: jnp.concatenate(
        [w, jnp.zeros((n - w.shape[0], w.shape[1]), w.dtype)], axis=0)
    zcols = lambda w, n: jnp.concatenate(
        [w, jnp.zeros((w.shape[0], n - w.shape[1]), w.dtype)], axis=1)
    # fold tanh(x) = 2*sigmoid(2x) - 1: scale the g-gate columns by 2.
    gscale = lambda m: m.at[:, 2 * H:3 * H].multiply(2.0)

    # inputs: time-major, stock/senti features concatenated, K zero-padded.
    xs = jnp.transpose(x_stock, (1, 0, 2)).reshape(T * B, I)
    xe = jnp.transpose(x_senti, (1, 0, 2)).reshape(T * B, S)
    xcat = zcols(jnp.concatenate([xs, xe], axis=-1), KPAD)

    # fold senti Linear + both layer-0 biases into the layer-0 gate projection.
    w_in0 = gscale(zrows(jnp.concatenate([w_ih0[:I, :], w_s @ w_ih0[I:, :]], 0), KPAD))
    b0 = gscale(b_s @ w_ih0[I:, :] + b_ih0 + b_hh0)

    # wavefront block weight [[W_hh0 | W_ih1],[0 | W_hh1]], zero-row padded.
    w_hh0_p = gscale(zrows(w_hh0, G))
    w_ih1_p = gscale(zrows(w_ih1, G))
    w_hh1_p = gscale(zrows(w_hh1, G))
    b1s = gscale(b_ih1 + b_hh1)
    w_blk = jnp.concatenate(
        [jnp.concatenate([w_hh0_p, w_ih1_p], axis=1),
         jnp.concatenate([jnp.zeros((G, G), jnp.float32), w_hh1_p], axis=1)], axis=0)

    # head: fc1 lane-padded; eval-mode BN folded into fc2.
    w1_p = zcols(zrows(w1, G), G)
    b1_p = zcols(b1, G)
    s_bn = gamma * jax.lax.rsqrt(rvar + BN_EPS)          # (1, H)
    w2_bn = w2 * jnp.transpose(s_bn)                     # row-scale fc2 weight
    b2_bn = (beta - rmean * s_bn) @ w2 + b2              # adjusted fc2 bias
    w2_p = zcols(zrows(w2_bn, G), OUT_PAD)
    b2_p = zcols(b2_bn, OUT_PAD)

    return [xcat, w_in0, b0, w_blk, b1s, w1_p, b1_p, w2_p, b2_p]


def build_simple_lstm(roll_like_jnp):
    H, L, C = HIDDEN, NUM_LAYERS, NUM_CLASSES
    assert L == 2, "wavefront kernel is specialized to num_layers == 2"
    if roll_like_jnp:
        # jnp.roll semantics: out[j] = in[(j - shift) mod N]
        shifts = (2 * H, 3 * H, H)      # (g, f, o)
    else:
        # inverted rotate: out[j] = in[(j + shift) mod N]
        shifts = (2 * H, H, 3 * H)

    @jax.jit
    def fwd(x_stock, x_senti, *params):
        B, T, I = x_stock.shape
        ops = _prep_inputs(x_stock, x_senti, params, H, I)
        vmem = pl.BlockSpec(memory_space=pltpu.MemorySpace.VMEM)
        out = pl.pallas_call(
            make_kernel(B, T, H, *shifts),
            out_shape=jax.ShapeDtypeStruct((B, OUT_PAD), jnp.float32),
            in_specs=[vmem] * len(ops),
            out_specs=vmem,
        )(*ops)
        return out[:, :C]
    return fwd


# -----------------------------------------------------------------------------
# Parameter init (PyTorch-style uniform bounds) and pure-JAX reference
# -----------------------------------------------------------------------------
def init_params(key, I, H, L, C):
    ks = iter(jax.random.split(key, 64))
    u = lambda k, shape, bound: jax.random.uniform(
        k, shape, jnp.float32, minval=-bound, maxval=bound)

    params = []
    bound = 1.0 / jnp.sqrt(SENTI_DIM)
    params += [u(next(ks), (SENTI_DIM, I), bound), u(next(ks), (1, I), bound)]
    bound = 1.0 / jnp.sqrt(H)
    for l in range(L):
        in_l = 2 * I if l == 0 else H
        params += [u(next(ks), (in_l, 4 * H), bound),   # W_ih^T
                   u(next(ks), (H, 4 * H), bound),      # W_hh^T
                   u(next(ks), (1, 4 * H), bound),      # b_ih
                   u(next(ks), (1, 4 * H), bound)]      # b_hh
    bound = 1.0 / jnp.sqrt(H)
    params += [u(next(ks), (H, H), bound), u(next(ks), (1, H), bound)]      # fc1
    params += [jnp.ones((1, H), jnp.float32), jnp.zeros((1, H), jnp.float32),
               jnp.zeros((1, H), jnp.float32), jnp.ones((1, H), jnp.float32)]  # BN
    bound = 1.0 / jnp.sqrt(H)
    params += [u(next(ks), (H, C), bound), u(next(ks), (1, C), bound)]      # fc2
    return params


def simple_lstm_reference(x_stock, x_senti, *params):
    """Pure-JAX reference with the original (unfolded) module math."""
    B, T, I = x_stock.shape
    H, L, C = HIDDEN, NUM_LAYERS, NUM_CLASSES
    w_s, b_s = params[0], params[1]
    p = 2
    lstm = []
    for _ in range(L):
        lstm.append(params[p:p + 4]); p += 4
    w1, b1, gamma, beta, rmean, rvar, w2, b2 = params[p:p + 8]

    sp = (x_senti.reshape(B * T, SENTI_DIM) @ w_s + b_s).reshape(B, T, I)
    x = jnp.concatenate([x_stock, sp], -1)
    h = [jnp.zeros((B, H), jnp.float32) for _ in range(L)]
    c = [jnp.zeros((B, H), jnp.float32) for _ in range(L)]
    for t in range(T):
        for l in range(L):
            w_ih, w_hh, b_ih, b_hh = lstm[l]
            inp = x[:, t, :] if l == 0 else h[l - 1]
            g = inp @ w_ih + b_ih + h[l] @ w_hh + b_hh
            i_g = jax.nn.sigmoid(g[:, :H]); f_g = jax.nn.sigmoid(g[:, H:2 * H])
            g_g = jnp.tanh(g[:, 2 * H:3 * H]); o_g = jax.nn.sigmoid(g[:, 3 * H:])
            c[l] = f_g * c[l] + i_g * g_g
            h[l] = o_g * jnp.tanh(c[l])
    y = jnp.maximum(h[-1] @ w1 + b1, 0.0)
    y = (y - rmean) * jax.lax.rsqrt(rvar + BN_EPS) * gamma + beta
    return y @ w2 + b2


if __name__ == "__main__":
    key = jax.random.PRNGKey(0)
    k_stock, k_senti, k_params = jax.random.split(key, 3)

    x_stock = jax.random.normal(k_stock, (BATCH, SEQ, INPUT_SIZE), jnp.float32)
    x_senti = jax.random.normal(k_senti, (BATCH, SEQ, SENTI_DIM), jnp.float32)
    params = init_params(k_params, INPUT_SIZE, HIDDEN, NUM_LAYERS, NUM_CLASSES)

    fwd = build_simple_lstm(roll_like_jnp=_roll_matches_jnp_roll())
    out = jax.block_until_ready(fwd(x_stock, x_senti, *params))

    ref = simple_lstm_reference(x_stock, x_senti, *params)
    assert out.shape == (BATCH, NUM_CLASSES)
    # folded weights/biases + 2*sigmoid(2x)-1 identity change f32 rounding
    # order slightly -> small tolerance vs. the unfolded reference.
    assert jnp.allclose(out, ref, atol=2e-4, rtol=2e-4), (out, ref)

    print("KERNEL_OK")
</pallas_src>

<mosaic_0001>
module attributes {stable_mosaic.version = 11 : i64} {
  func.func @kernel(%arg0: memref<16x512xf32, #tpu.memory_space<vmem>>, %arg1: memref<512x128xf32, #tpu.memory_space<vmem>>, %arg2: memref<1x128xf32, #tpu.memory_space<vmem>>, %arg3: memref<256x256xf32, #tpu.memory_space<vmem>>, %arg4: memref<1x128xf32, #tpu.memory_space<vmem>>, %arg5: memref<128x128xf32, #tpu.memory_space<vmem>>, %arg6: memref<1x128xf32, #tpu.memory_space<vmem>>, %arg7: memref<128x128xf32, #tpu.memory_space<vmem>>, %arg8: memref<1x128xf32, #tpu.memory_space<vmem>>, %arg9: memref<2x128xf32, #tpu.memory_space<vmem>>) attributes {dimension_semantics = [], scalar_prefetch = 0 : i64, scratch_operands = 0 : i64, tpu.core_type = #tpu.core_type<tc>} {
    %c0 = arith.constant 0 : index
    %c0_0 = arith.constant 0 : index
    %0 = vector.load %arg0[%c0, %c0_0] : memref<16x512xf32, #tpu.memory_space<vmem>>, vector<16x512xf32>
    %c0_1 = arith.constant 0 : index
    %c0_2 = arith.constant 0 : index
    %1 = vector.load %arg1[%c0_1, %c0_2] : memref<512x128xf32, #tpu.memory_space<vmem>>, vector<512x128xf32>
    %cst = arith.constant dense<0.000000e+00> : vector<16x128xf32>
    %2 = tpu.matmul %0, %1, %cst {dimension_numbers = #tpu.dot_dimension_numbers<[1], [0], [0], [1], [0, 0, 1, 1], [], []>} : vector<16x512xf32>, vector<512x128xf32>, vector<16x128xf32> -> vector<16x128xf32>
    %c0_3 = arith.constant 0 : index
    %c0_4 = arith.constant 0 : index
    %3 = vector.load %arg2[%c0_3, %c0_4] : memref<1x128xf32, #tpu.memory_space<vmem>>, vector<1x128xf32>
    %4 = vector.broadcast %3 : vector<1x128xf32> to vector<16x128xf32>
    %5 = arith.addf %2, %4 : vector<16x128xf32>
    %cst_5 = arith.constant 0.000000e+00 : f32
    %6 = vector.broadcast %cst_5 : f32 to vector<2x128xf32>
    %7 = vector.extract_strided_slice %5 {offsets = [0, 0], sizes = [2, 128], strides = [1, 1]} : vector<16x128xf32> to vector<2x128xf32>
    %8 = arith.negf %7 : vector<2x128xf32>
    %9 = math.exp %8 : vector<2x128xf32>
    %cst_6 = arith.constant 1.000000e+00 : f32
    %10 = vector.broadcast %cst_6 : f32 to vector<2x128xf32>
    %11 = arith.addf %10, %9 : vector<2x128xf32>
    %12 = arith.divf %10, %11 : vector<2x128xf32>
    %cst_7 = arith.constant 2.000000e+00 : f32
    %13 = vector.broadcast %cst_7 : f32 to vector<2x128xf32>
    %14 = arith.mulf %13, %12 : vector<2x128xf32>
    %cst_8 = arith.constant 1.000000e+00 : f32
    %15 = vector.broadcast %cst_8 : f32 to vector<2x128xf32>
    %16 = arith.subf %14, %15 : vector<2x128xf32>
    %c64_i32 = arith.constant 64 : i32
    %17 = tpu.dynamic_rotate %16 by %c64_i32 dim 1 : vector<2x128xf32>, i32 -> vector<2x128xf32>
    %18 = arith.mulf %12, %17 : vector<2x128xf32>
    %c96_i32 = arith.constant 96 : i32
    %19 = tpu.dynamic_rotate %12 by %c96_i32 dim 1 : vector<2x128xf32>, i32 -> vector<2x128xf32>
    %20 = arith.mulf %19, %6 : vector<2x128xf32>
    %21 = arith.addf %18, %20 : vector<2x128xf32>
    %c32_i32 = arith.constant 32 : i32
    %22 = tpu.dynamic_rotate %12 by %c32_i32 dim 1 : vector<2x128xf32>, i32 -> vector<2x128xf32>
    %23 = math.tanh %21 : vector<2x128xf32>
    %24 = arith.mulf %22, %23 : vector<2x128xf32>
    %25 = tpu.concatenate %24, %6 in 1 : vector<2x128xf32>, vector<2x128xf32> -> vector<2x256xf32>
    %c0_9 = arith.constant 0 : index
    %c0_10 = arith.constant 0 : index
    %26 = vector.load %arg3[%c0_9, %c0_10] : memref<256x256xf32, #tpu.memory_space<vmem>>, vector<256x256xf32>
    %cst_11 = arith.constant dense<0.000000e+00> : vector<2x256xf32>
    %27 = tpu.matmul %25, %26, %cst_11 {dimension_numbers = #tpu.dot_dimension_numbers<[1], [0], [0], [1], [0, 0, 1, 1], [], []>} : vector<2x256xf32>, vector<256x256xf32>, vector<2x256xf32> -> vector<2x256xf32>
    %28 = vector.extract_strided_slice %27 {offsets = [0, 0], sizes = [2, 128], strides = [1, 1]} : vector<2x256xf32> to vector<2x128xf32>
    %29 = vector.extract_strided_slice %5 {offsets = [2, 0], sizes = [2, 128], strides = [1, 1]} : vector<16x128xf32> to vector<2x128xf32>
    %30 = arith.addf %28, %29 : vector<2x128xf32>
    %31 = vector.extract_strided_slice %27 {offsets = [0, 128], sizes = [2, 128], strides = [1, 1]} : vector<2x256xf32> to vector<2x128xf32>
    %c0_12 = arith.constant 0 : index
    %c0_13 = arith.constant 0 : index
    %32 = vector.load %arg4[%c0_12, %c0_13] : memref<1x128xf32, #tpu.memory_space<vmem>>, vector<1x128xf32>
    %33 = vector.broadcast %32 : vector<1x128xf32> to vector<2x128xf32>
    %34 = arith.addf %31, %33 : vector<2x128xf32>
    %35 = arith.negf %30 : vector<2x128xf32>
    %36 = math.exp %35 : vector<2x128xf32>
    %cst_14 = arith.constant 1.000000e+00 : f32
    %37 = vector.broadcast %cst_14 : f32 to vector<2x128xf32>
    %38 = arith.addf %37, %36 : vector<2x128xf32>
    %39 = arith.divf %37, %38 : vector<2x128xf32>
    %cst_15 = arith.constant 2.000000e+00 : f32
    %40 = vector.broadcast %cst_15 : f32 to vector<2x128xf32>
    %41 = arith.mulf %40, %39 : vector<2x128xf32>
    %cst_16 = arith.constant 1.000000e+00 : f32
    %42 = vector.broadcast %cst_16 : f32 to vector<2x128xf32>
    %43 = arith.subf %41, %42 : vector<2x128xf32>
    %c64_i32_17 = arith.constant 64 : i32
    %44 = tpu.dynamic_rotate %43 by %c64_i32_17 dim 1 : vector<2x128xf32>, i32 -> vector<2x128xf32>
    %45 = arith.mulf %39, %44 : vector<2x128xf32>
    %c96_i32_18 = arith.constant 96 : i32
    %46 = tpu.dynamic_rotate %39 by %c96_i32_18 dim 1 : vector<2x128xf32>, i32 -> vector<2x128xf32>
    %47 = arith.mulf %46, %21 : vector<2x128xf32>
    %48 = arith.addf %45, %47 : vector<2x128xf32>
    %c32_i32_19 = arith.constant 32 : i32
    %49 = tpu.dynamic_rotate %39 by %c32_i32_19 dim 1 : vector<2x128xf32>, i32 -> vector<2x128xf32>
    %50 = math.tanh %48 : vector<2x128xf32>
    %51 = arith.mulf %49, %50 : vector<2x128xf32>
    %52 = arith.negf %34 : vector<2x128xf32>
    %53 = math.exp %52 : vector<2x128xf32>
    %cst_20 = arith.constant 1.000000e+00 : f32
    %54 = vector.broadcast %cst_20 : f32 to vector<2x128xf32>
    %55 = arith.addf %54, %53 : vector<2x128xf32>
    %56 = arith.divf %54, %55 : vector<2x128xf32>
    %cst_21 = arith.constant 2.000000e+00 : f32
    %57 = vector.broadcast %cst_21 : f32 to vector<2x128xf32>
    %58 = arith.mulf %57, %56 : vector<2x128xf32>
    %cst_22 = arith.constant 1.000000e+00 : f32
    %59 = vector.broadcast %cst_22 : f32 to vector<2x128xf32>
    %60 = arith.subf %58, %59 : vector<2x128xf32>
    %c64_i32_23 = arith.constant 64 : i32
    %61 = tpu.dynamic_rotate %60 by %c64_i32_23 dim 1 : vector<2x128xf32>, i32 -> vector<2x128xf32>
    %62 = arith.mulf %56, %61 : vector<2x128xf32>
    %c96_i32_24 = arith.constant 96 : i32
    %63 = tpu.dynamic_rotate %56 by %c96_i32_24 dim 1 : vector<2x128xf32>, i32 -> vector<2x128xf32>
    %64 = arith.mulf %63, %6 : vector<2x128xf32>
    %65 = arith.addf %62, %64 : vector<2x128xf32>
    %c32_i32_25 = arith.constant 32 : i32
    %66 = tpu.dynamic_rotate %56 by %c32_i32_25 dim 1 : vector<2x128xf32>, i32 -> vector<2x128xf32>
    %67 = math.tanh %65 : vector<2x128xf32>
    %68 = arith.mulf %66, %67 : vector<2x128xf32>
    %69 = tpu.concatenate %51, %68 in 1 : vector<2x128xf32>, vector<2x128xf32> -> vector<2x256xf32>
    %c0_26 = arith.constant 0 : index
    %c0_27 = arith.constant 0 : index
    %70 = vector.load %arg3[%c0_26, %c0_27] : memref<256x256xf32, #tpu.memory_space<vmem>>, vector<256x256xf32>
    %cst_28 = arith.constant dense<0.000000e+00> : vector<2x256xf32>
    %71 = tpu.matmul %69, %70, %cst_28 {dimension_numbers = #tpu.dot_dimension_numbers<[1], [0], [0], [1], [0, 0, 1, 1], [], []>} : vector<2x256xf32>, vector<256x256xf32>, vector<2x256xf32> -> vector<2x256xf32>
    %72 = vector.extract_strided_slice %71 {offsets = [0, 0], sizes = [2, 128], strides = [1, 1]} : vector<2x256xf32> to vector<2x128xf32>
    %73 = vector.extract_strided_slice %5 {offsets = [4, 0], sizes = [2, 128], strides = [1, 1]} : vector<16x128xf32> to vector<2x128xf32>
    %74 = arith.addf %72, %73 : vector<2x128xf32>
    %75 = vector.extract_strided_slice %71 {offsets = [0, 128], sizes = [2, 128], strides = [1, 1]} : vector<2x256xf32> to vector<2x128xf32>
    %c0_29 = arith.constant 0 : index
    %c0_30 = arith.constant 0 : index
    %76 = vector.load %arg4[%c0_29, %c0_30] : memref<1x128xf32, #tpu.memory_space<vmem>>, vector<1x128xf32>
    %77 = vector.broadcast %76 : vector<1x128xf32> to vector<2x128xf32>
    %78 = arith.addf %75, %77 : vector<2x128xf32>
    %79 = arith.negf %74 : vector<2x128xf32>
    %80 = math.exp %79 : vector<2x128xf32>
    %cst_31 = arith.constant 1.000000e+00 : f32
    %81 = vector.broadcast %cst_31 : f32 to vector<2x128xf32>
    %82 = arith.addf %81, %80 : vector<2x128xf32>
    %83 = arith.divf %81, %82 : vector<2x128xf32>
    %cst_32 = arith.constant 2.000000e+00 : f32
    %84 = vector.broadcast %cst_32 : f32 to vector<2x128xf32>
    %85 = arith.mulf %84, %83 : vector<2x128xf32>
    %cst_33 = arith.constant 1.000000e+00 : f32
    %86 = vector.broadcast %cst_33 : f32 to vector<2x128xf32>
    %87 = arith.subf %85, %86 : vector<2x128xf32>
    %c64_i32_34 = arith.constant 64 : i32
    %88 = tpu.dynamic_rotate %87 by %c64_i32_34 dim 1 : vector<2x128xf32>, i32 -> vector<2x128xf32>
    %89 = arith.mulf %83, %88 : vector<2x128xf32>
    %c96_i32_35 = arith.constant 96 : i32
    %90 = tpu.dynamic_rotate %83 by %c96_i32_35 dim 1 : vector<2x128xf32>, i32 -> vector<2x128xf32>
    %91 = arith.mulf %90, %48 : vector<2x128xf32>
    %92 = arith.addf %89, %91 : vector<2x128xf32>
    %c32_i32_36 = arith.constant 32 : i32
    %93 = tpu.dynamic_rotate %83 by %c32_i32_36 dim 1 : vector<2x128xf32>, i32 -> vector<2x128xf32>
    %94 = math.tanh %92 : vector<2x128xf32>
    %95 = arith.mulf %93, %94 : vector<2x128xf32>
    %96 = arith.negf %78 : vector<2x128xf32>
    %97 = math.exp %96 : vector<2x128xf32>
    %cst_37 = arith.constant 1.000000e+00 : f32
    %98 = vector.broadcast %cst_37 : f32 to vector<2x128xf32>
    %99 = arith.addf %98, %97 : vector<2x128xf32>
    %100 = arith.divf %98, %99 : vector<2x128xf32>
    %cst_38 = arith.constant 2.000000e+00 : f32
    %101 = vector.broadcast %cst_38 : f32 to vector<2x128xf32>
    %102 = arith.mulf %101, %100 : vector<2x128xf32>
    %cst_39 = arith.constant 1.000000e+00 : f32
    %103 = vector.broadcast %cst_39 : f32 to vector<2x128xf32>
    %104 = arith.subf %102, %103 : vector<2x128xf32>
    %c64_i32_40 = arith.constant 64 : i32
    %105 = tpu.dynamic_rotate %104 by %c64_i32_40 dim 1 : vector<2x128xf32>, i32 -> vector<2x128xf32>
    %106 = arith.mulf %100, %105 : vector<2x128xf32>
    %c96_i32_41 = arith.constant 96 : i32
    %107 = tpu.dynamic_rotate %100 by %c96_i32_41 dim 1 : vector<2x128xf32>, i32 -> vector<2x128xf32>
    %108 = arith.mulf %107, %65 : vector<2x128xf32>
    %109 = arith.addf %106, %108 : vector<2x128xf32>
    %c32_i32_42 = arith.constant 32 : i32
    %110 = tpu.dynamic_rotate %100 by %c32_i32_42 dim 1 : vector<2x128xf32>, i32 -> vector<2x128xf32>
    %111 = math.tanh %109 : vector<2x128xf32>
    %112 = arith.mulf %110, %111 : vector<2x128xf32>
    %113 = tpu.concatenate %95, %112 in 1 : vector<2x128xf32>, vector<2x128xf32> -> vector<2x256xf32>
    %c0_43 = arith.constant 0 : index
    %c0_44 = arith.constant 0 : index
    %114 = vector.load %arg3[%c0_43, %c0_44] : memref<256x256xf32, #tpu.memory_space<vmem>>, vector<256x256xf32>
    %cst_45 = arith.constant dense<0.000000e+00> : vector<2x256xf32>
    %115 = tpu.matmul %113, %114, %cst_45 {dimension_numbers = #tpu.dot_dimension_numbers<[1], [0], [0], [1], [0, 0, 1, 1], [], []>} : vector<2x256xf32>, vector<256x256xf32>, vector<2x256xf32> -> vector<2x256xf32>
    %116 = vector.extract_strided_slice %115 {offsets = [0, 0], sizes = [2, 128], strides = [1, 1]} : vector<2x256xf32> to vector<2x128xf32>
    %117 = vector.extract_strided_slice %5 {offsets = [6, 0], sizes = [2, 128], strides = [1, 1]} : vector<16x128xf32> to vector<2x128xf32>
    %118 = arith.addf %116, %117 : vector<2x128xf32>
    %119 = vector.extract_strided_slice %115 {offsets = [0, 128], sizes = [2, 128], strides = [1, 1]} : vector<2x256xf32> to vector<2x128xf32>
    %c0_46 = arith.constant 0 : index
    %c0_47 = arith.constant 0 : index
    %120 = vector.load %arg4[%c0_46, %c0_47] : memref<1x128xf32, #tpu.memory_space<vmem>>, vector<1x128xf32>
    %121 = vector.broadcast %120 : vector<1x128xf32> to vector<2x128xf32>
    %122 = arith.addf %119, %121 : vector<2x128xf32>
    %123 = arith.negf %118 : vector<2x128xf32>
    %124 = math.exp %123 : vector<2x128xf32>
    %cst_48 = arith.constant 1.000000e+00 : f32
    %125 = vector.broadcast %cst_48 : f32 to vector<2x128xf32>
    %126 = arith.addf %125, %124 : vector<2x128xf32>
    %127 = arith.divf %125, %126 : vector<2x128xf32>
    %cst_49 = arith.constant 2.000000e+00 : f32
    %128 = vector.broadcast %cst_49 : f32 to vector<2x128xf32>
    %129 = arith.mulf %128, %127 : vector<2x128xf32>
    %cst_50 = arith.constant 1.000000e+00 : f32
    %130 = vector.broadcast %cst_50 : f32 to vector<2x128xf32>
    %131 = arith.subf %129, %130 : vector<2x128xf32>
    %c64_i32_51 = arith.constant 64 : i32
    %132 = tpu.dynamic_rotate %131 by %c64_i32_51 dim 1 : vector<2x128xf32>, i32 -> vector<2x128xf32>
    %133 = arith.mulf %127, %132 : vector<2x128xf32>
    %c96_i32_52 = arith.constant 96 : i32
    %134 = tpu.dynamic_rotate %127 by %c96_i32_52 dim 1 : vector<2x128xf32>, i32 -> vector<2x128xf32>
    %135 = arith.mulf %134, %92 : vector<2x128xf32>
    %136 = arith.addf %133, %135 : vector<2x128xf32>
    %c32_i32_53 = arith.constant 32 : i32
    %137 = tpu.dynamic_rotate %127 by %c32_i32_53 dim 1 : vector<2x128xf32>, i32 -> vector<2x128xf32>
    %138 = math.tanh %136 : vector<2x128xf32>
    %139 = arith.mulf %137, %138 : vector<2x128xf32>
    %140 = arith.negf %122 : vector<2x128xf32>
    %141 = math.exp %140 : vector<2x128xf32>
    %cst_54 = arith.constant 1.000000e+00 : f32
    %142 = vector.broadcast %cst_54 : f32 to vector<2x128xf32>
    %143 = arith.addf %142, %141 : vector<2x128xf32>
    %144 = arith.divf %142, %143 : vector<2x128xf32>
    %cst_55 = arith.constant 2.000000e+00 : f32
    %145 = vector.broadcast %cst_55 : f32 to vector<2x128xf32>
    %146 = arith.mulf %145, %144 : vector<2x128xf32>
    %cst_56 = arith.constant 1.000000e+00 : f32
    %147 = vector.broadcast %cst_56 : f32 to vector<2x128xf32>
    %148 = arith.subf %146, %147 : vector<2x128xf32>
    %c64_i32_57 = arith.constant 64 : i32
    %149 = tpu.dynamic_rotate %148 by %c64_i32_57 dim 1 : vector<2x128xf32>, i32 -> vector<2x128xf32>
    %150 = arith.mulf %144, %149 : vector<2x128xf32>
    %c96_i32_58 = arith.constant 96 : i32
    %151 = tpu.dynamic_rotate %144 by %c96_i32_58 dim 1 : vector<2x128xf32>, i32 -> vector<2x128xf32>
    %152 = arith.mulf %151, %109 : vector<2x128xf32>
    %153 = arith.addf %150, %152 : vector<2x128xf32>
    %c32_i32_59 = arith.constant 32 : i32
    %154 = tpu.dynamic_rotate %144 by %c32_i32_59 dim 1 : vector<2x128xf32>, i32 -> vector<2x128xf32>
    %155 = math.tanh %153 : vector<2x128xf32>
    %156 = arith.mulf %154, %155 : vector<2x128xf32>
    %157 = tpu.concatenate %139, %156 in 1 : vector<2x128xf32>, vector<2x128xf32> -> vector<2x256xf32>
    %c0_60 = arith.constant 0 : index
    %c0_61 = arith.constant 0 : index
    %158 = vector.load %arg3[%c0_60, %c0_61] : memref<256x256xf32, #tpu.memory_space<vmem>>, vector<256x256xf32>
    %cst_62 = arith.constant dense<0.000000e+00> : vector<2x256xf32>
    %159 = tpu.matmul %157, %158, %cst_62 {dimension_numbers = #tpu.dot_dimension_numbers<[1], [0], [0], [1], [0, 0, 1, 1], [], []>} : vector<2x256xf32>, vector<256x256xf32>, vector<2x256xf32> -> vector<2x256xf32>
    %160 = vector.extract_strided_slice %159 {offsets = [0, 0], sizes = [2, 128], strides = [1, 1]} : vector<2x256xf32> to vector<2x128xf32>
    %161 = vector.extract_strided_slice %5 {offsets = [8, 0], sizes = [2, 128], strides = [1, 1]} : vector<16x128xf32> to vector<2x128xf32>
    %162 = arith.addf %160, %161 : vector<2x128xf32>
    %163 = vector.extract_strided_slice %159 {offsets = [0, 128], sizes = [2, 128], strides = [1, 1]} : vector<2x256xf32> to vector<2x128xf32>
    %c0_63 = arith.constant 0 : index
    %c0_64 = arith.constant 0 : index
    %164 = vector.load %arg4[%c0_63, %c0_64] : memref<1x128xf32, #tpu.memory_space<vmem>>, vector<1x128xf32>
    %165 = vector.broadcast %164 : vector<1x128xf32> to vector<2x128xf32>
    %166 = arith.addf %163, %165 : vector<2x128xf32>
    %167 = arith.negf %162 : vector<2x128xf32>
    %168 = math.exp %167 : vector<2x128xf32>
    %cst_65 = arith.constant 1.000000e+00 : f32
    %169 = vector.broadcast %cst_65 : f32 to vector<2x128xf32>
    %170 = arith.addf %169, %168 : vector<2x128xf32>
    %171 = arith.divf %169, %170 : vector<2x128xf32>
    %cst_66 = arith.constant 2.000000e+00 : f32
    %172 = vector.broadcast %cst_66 : f32 to vector<2x128xf32>
    %173 = arith.mulf %172, %171 : vector<2x128xf32>
    %cst_67 = arith.constant 1.000000e+00 : f32
    %174 = vector.broadcast %cst_67 : f32 to vector<2x128xf32>
    %175 = arith.subf %173, %174 : vector<2x128xf32>
    %c64_i32_68 = arith.constant 64 : i32
    %176 = tpu.dynamic_rotate %175 by %c64_i32_68 dim 1 : vector<2x128xf32>, i32 -> vector<2x128xf32>
    %177 = arith.mulf %171, %176 : vector<2x128xf32>
    %c96_i32_69 = arith.constant 96 : i32
    %178 = tpu.dynamic_rotate %171 by %c96_i32_69 dim 1 : vector<2x128xf32>, i32 -> vector<2x128xf32>
    %179 = arith.mulf %178, %136 : vector<2x128xf32>
    %180 = arith.addf %177, %179 : vector<2x128xf32>
    %c32_i32_70 = arith.constant 32 : i32
    %181 = tpu.dynamic_rotate %171 by %c32_i32_70 dim 1 : vector<2x128xf32>, i32 -> vector<2x128xf32>
    %182 = math.tanh %180 : vector<2x128xf32>
    %183 = arith.mulf %181, %182 : vector<2x128xf32>
    %184 = arith.negf %166 : vector<2x128xf32>
    %185 = math.exp %184 : vector<2x128xf32>
    %cst_71 = arith.constant 1.000000e+00 : f32
    %186 = vector.broadcast %cst_71 : f32 to vector<2x128xf32>
    %187 = arith.addf %186, %185 : vector<2x128xf32>
    %188 = arith.divf %186, %187 : vector<2x128xf32>
    %cst_72 = arith.constant 2.000000e+00 : f32
    %189 = vector.broadcast %cst_72 : f32 to vector<2x128xf32>
    %190 = arith.mulf %189, %188 : vector<2x128xf32>
    %cst_73 = arith.constant 1.000000e+00 : f32
    %191 = vector.broadcast %cst_73 : f32 to vector<2x128xf32>
    %192 = arith.subf %190, %191 : vector<2x128xf32>
    %c64_i32_74 = arith.constant 64 : i32
    %193 = tpu.dynamic_rotate %192 by %c64_i32_74 dim 1 : vector<2x128xf32>, i32 -> vector<2x128xf32>
    %194 = arith.mulf %188, %193 : vector<2x128xf32>
    %c96_i32_75 = arith.constant 96 : i32
    %195 = tpu.dynamic_rotate %188 by %c96_i32_75 dim 1 : vector<2x128xf32>, i32 -> vector<2x128xf32>
    %196 = arith.mulf %195, %153 : vector<2x128xf32>
    %197 = arith.addf %194, %196 : vector<2x128xf32>
    %c32_i32_76 = arith.constant 32 : i32
    %198 = tpu.dynamic_rotate %188 by %c32_i32_76 dim 1 : vector<2x128xf32>, i32 -> vector<2x128xf32>
    %199 = math.tanh %197 : vector<2x128xf32>
    %200 = arith.mulf %198, %199 : vector<2x128xf32>
    %201 = tpu.concatenate %183, %200 in 1 : vector<2x128xf32>, vector<2x128xf32> -> vector<2x256xf32>
    %c0_77 = arith.constant 0 : index
    %c0_78 = arith.constant 0 : index
    %202 = vector.load %arg3[%c0_77, %c0_78] : memref<256x256xf32, #tpu.memory_space<vmem>>, vector<256x256xf32>
    %cst_79 = arith.constant dense<0.000000e+00> : vector<2x256xf32>
    %203 = tpu.matmul %201, %202, %cst_79 {dimension_numbers = #tpu.dot_dimension_numbers<[1], [0], [0], [1], [0, 0, 1, 1], [], []>} : vector<2x256xf32>, vector<256x256xf32>, vector<2x256xf32> -> vector<2x256xf32>
    %204 = vector.extract_strided_slice %203 {offsets = [0, 0], sizes = [2, 128], strides = [1, 1]} : vector<2x256xf32> to vector<2x128xf32>
    %205 = vector.extract_strided_slice %5 {offsets = [10, 0], sizes = [2, 128], strides = [1, 1]} : vector<16x128xf32> to vector<2x128xf32>
    %206 = arith.addf %204, %205 : vector<2x128xf32>
    %207 = vector.extract_strided_slice %203 {offsets = [0, 128], sizes = [2, 128], strides = [1, 1]} : vector<2x256xf32> to vector<2x128xf32>
    %c0_80 = arith.constant 0 : index
    %c0_81 = arith.constant 0 : index
    %208 = vector.load %arg4[%c0_80, %c0_81] : memref<1x128xf32, #tpu.memory_space<vmem>>, vector<1x128xf32>
    %209 = vector.broadcast %208 : vector<1x128xf32> to vector<2x128xf32>
    %210 = arith.addf %207, %209 : vector<2x128xf32>
    %211 = arith.negf %206 : vector<2x128xf32>
    %212 = math.exp %211 : vector<2x128xf32>
    %cst_82 = arith.constant 1.000000e+00 : f32
    %213 = vector.broadcast %cst_82 : f32 to vector<2x128xf32>
    %214 = arith.addf %213, %212 : vector<2x128xf32>
    %215 = arith.divf %213, %214 : vector<2x128xf32>
    %cst_83 = arith.constant 2.000000e+00 : f32
    %216 = vector.broadcast %cst_83 : f32 to vector<2x128xf32>
    %217 = arith.mulf %216, %215 : vector<2x128xf32>
    %cst_84 = arith.constant 1.000000e+00 : f32
    %218 = vector.broadcast %cst_84 : f32 to vector<2x128xf32>
    %219 = arith.subf %217, %218 : vector<2x128xf32>
    %c64_i32_85 = arith.constant 64 : i32
    %220 = tpu.dynamic_rotate %219 by %c64_i32_85 dim 1 : vector<2x128xf32>, i32 -> vector<2x128xf32>
    %221 = arith.mulf %215, %220 : vector<2x128xf32>
    %c96_i32_86 = arith.constant 96 : i32
    %222 = tpu.dynamic_rotate %215 by %c96_i32_86 dim 1 : vector<2x128xf32>, i32 -> vector<2x128xf32>
    %223 = arith.mulf %222, %180 : vector<2x128xf32>
    %224 = arith.addf %221, %223 : vector<2x128xf32>
    %c32_i32_87 = arith.constant 32 : i32
    %225 = tpu.dynamic_rotate %215 by %c32_i32_87 dim 1 : vector<2x128xf32>, i32 -> vector<2x128xf32>
    %226 = math.tanh %224 : vector<2x128xf32>
    %227 = arith.mulf %225, %226 : vector<2x128xf32>
    %228 = arith.negf %210 : vector<2x128xf32>
    %229 = math.exp %228 : vector<2x128xf32>
    %cst_88 = arith.constant 1.000000e+00 : f32
    %230 = vector.broadcast %cst_88 : f32 to vector<2x128xf32>
    %231 = arith.addf %230, %229 : vector<2x128xf32>
    %232 = arith.divf %230, %231 : vector<2x128xf32>
    %cst_89 = arith.constant 2.000000e+00 : f32
    %233 = vector.broadcast %cst_89 : f32 to vector<2x128xf32>
    %234 = arith.mulf %233, %232 : vector<2x128xf32>
    %cst_90 = arith.constant 1.000000e+00 : f32
    %235 = vector.broadcast %cst_90 : f32 to vector<2x128xf32>
    %236 = arith.subf %234, %235 : vector<2x128xf32>
    %c64_i32_91 = arith.constant 64 : i32
    %237 = tpu.dynamic_rotate %236 by %c64_i32_91 dim 1 : vector<2x128xf32>, i32 -> vector<2x128xf32>
    %238 = arith.mulf %232, %237 : vector<2x128xf32>
    %c96_i32_92 = arith.constant 96 : i32
    %239 = tpu.dynamic_rotate %232 by %c96_i32_92 dim 1 : vector<2x128xf32>, i32 -> vector<2x128xf32>
    %240 = arith.mulf %239, %197 : vector<2x128xf32>
    %241 = arith.addf %238, %240 : vector<2x128xf32>
    %c32_i32_93 = arith.constant 32 : i32
    %242 = tpu.dynamic_rotate %232 by %c32_i32_93 dim 1 : vector<2x128xf32>, i32 -> vector<2x128xf32>
    %243 = math.tanh %241 : vector<2x128xf32>
    %244 = arith.mulf %242, %243 : vector<2x128xf32>
    %245 = tpu.concatenate %227, %244 in 1 : vector<2x128xf32>, vector<2x128xf32> -> vector<2x256xf32>
    %c0_94 = arith.constant 0 : index
    %c0_95 = arith.constant 0 : index
    %246 = vector.load %arg3[%c0_94, %c0_95] : memref<256x256xf32, #tpu.memory_space<vmem>>, vector<256x256xf32>
    %cst_96 = arith.constant dense<0.000000e+00> : vector<2x256xf32>
    %247 = tpu.matmul %245, %246, %cst_96 {dimension_numbers = #tpu.dot_dimension_numbers<[1], [0], [0], [1], [0, 0, 1, 1], [], []>} : vector<2x256xf32>, vector<256x256xf32>, vector<2x256xf32> -> vector<2x256xf32>
    %248 = vector.extract_strided_slice %247 {offsets = [0, 0], sizes = [2, 128], strides = [1, 1]} : vector<2x256xf32> to vector<2x128xf32>
    %249 = vector.extract_strided_slice %5 {offsets = [12, 0], sizes = [2, 128], strides = [1, 1]} : vector<16x128xf32> to vector<2x128xf32>
    %250 = arith.addf %248, %249 : vector<2x128xf32>
    %251 = vector.extract_strided_slice %247 {offsets = [0, 128], sizes = [2, 128], strides = [1, 1]} : vector<2x256xf32> to vector<2x128xf32>
    %c0_97 = arith.constant 0 : index
    %c0_98 = arith.constant 0 : index
    %252 = vector.load %arg4[%c0_97, %c0_98] : memref<1x128xf32, #tpu.memory_space<vmem>>, vector<1x128xf32>
    %253 = vector.broadcast %252 : vector<1x128xf32> to vector<2x128xf32>
    %254 = arith.addf %251, %253 : vector<2x128xf32>
    %255 = arith.negf %250 : vector<2x128xf32>
    %256 = math.exp %255 : vector<2x128xf32>
    %cst_99 = arith.constant 1.000000e+00 : f32
    %257 = vector.broadcast %cst_99 : f32 to vector<2x128xf32>
    %258 = arith.addf %257, %256 : vector<2x128xf32>
    %259 = arith.divf %257, %258 : vector<2x128xf32>
    %cst_100 = arith.constant 2.000000e+00 : f32
    %260 = vector.broadcast %cst_100 : f32 to vector<2x128xf32>
    %261 = arith.mulf %260, %259 : vector<2x128xf32>
    %cst_101 = arith.constant 1.000000e+00 : f32
    %262 = vector.broadcast %cst_101 : f32 to vector<2x128xf32>
    %263 = arith.subf %261, %262 : vector<2x128xf32>
    %c64_i32_102 = arith.constant 64 : i32
    %264 = tpu.dynamic_rotate %263 by %c64_i32_102 dim 1 : vector<2x128xf32>, i32 -> vector<2x128xf32>
    %265 = arith.mulf %259, %264 : vector<2x128xf32>
    %c96_i32_103 = arith.constant 96 : i32
    %266 = tpu.dynamic_rotate %259 by %c96_i32_103 dim 1 : vector<2x128xf32>, i32 -> vector<2x128xf32>
    %267 = arith.mulf %266, %224 : vector<2x128xf32>
    %268 = arith.addf %265, %267 : vector<2x128xf32>
    %c32_i32_104 = arith.constant 32 : i32
    %269 = tpu.dynamic_rotate %259 by %c32_i32_104 dim 1 : vector<2x128xf32>, i32 -> vector<2x128xf32>
    %270 = math.tanh %268 : vector<2x128xf32>
    %271 = arith.mulf %269, %270 : vector<2x128xf32>
    %272 = arith.negf %254 : vector<2x128xf32>
    %273 = math.exp %272 : vector<2x128xf32>
    %cst_105 = arith.constant 1.000000e+00 : f32
    %274 = vector.broadcast %cst_105 : f32 to vector<2x128xf32>
    %275 = arith.addf %274, %273 : vector<2x128xf32>
    %276 = arith.divf %274, %275 : vector<2x128xf32>
    %cst_106 = arith.constant 2.000000e+00 : f32
    %277 = vector.broadcast %cst_106 : f32 to vector<2x128xf32>
    %278 = arith.mulf %277, %276 : vector<2x128xf32>
    %cst_107 = arith.constant 1.000000e+00 : f32
    %279 = vector.broadcast %cst_107 : f32 to vector<2x128xf32>
    %280 = arith.subf %278, %279 : vector<2x128xf32>
    %c64_i32_108 = arith.constant 64 : i32
    %281 = tpu.dynamic_rotate %280 by %c64_i32_108 dim 1 : vector<2x128xf32>, i32 -> vector<2x128xf32>
    %282 = arith.mulf %276, %281 : vector<2x128xf32>
    %c96_i32_109 = arith.constant 96 : i32
    %283 = tpu.dynamic_rotate %276 by %c96_i32_109 dim 1 : vector<2x128xf32>, i32 -> vector<2x128xf32>
    %284 = arith.mulf %283, %241 : vector<2x128xf32>
    %285 = arith.addf %282, %284 : vector<2x128xf32>
    %c32_i32_110 = arith.constant 32 : i32
    %286 = tpu.dynamic_rotate %276 by %c32_i32_110 dim 1 : vector<2x128xf32>, i32 -> vector<2x128xf32>
    %287 = math.tanh %285 : vector<2x128xf32>
    %288 = arith.mulf %286, %287 : vector<2x128xf32>
    %289 = tpu.concatenate %271, %288 in 1 : vector<2x128xf32>, vector<2x128xf32> -> vector<2x256xf32>
    %c0_111 = arith.constant 0 : index
    %c0_112 = arith.constant 0 : index
    %290 = vector.load %arg3[%c0_111, %c0_112] : memref<256x256xf32, #tpu.memory_space<vmem>>, vector<256x256xf32>
    %cst_113 = arith.constant dense<0.000000e+00> : vector<2x256xf32>
    %291 = tpu.matmul %289, %290, %cst_113 {dimension_numbers = #tpu.dot_dimension_numbers<[1], [0], [0], [1], [0, 0, 1, 1], [], []>} : vector<2x256xf32>, vector<256x256xf32>, vector<2x256xf32> -> vector<2x256xf32>
    %292 = vector.extract_strided_slice %291 {offsets = [0, 0], sizes = [2, 128], strides = [1, 1]} : vector<2x256xf32> to vector<2x128xf32>
    %293 = vector.extract_strided_slice %5 {offsets = [14, 0], sizes = [2, 128], strides = [1, 1]} : vector<16x128xf32> to vector<2x128xf32>
    %294 = arith.addf %292, %293 : vector<2x128xf32>
    %295 = vector.extract_strided_slice %291 {offsets = [0, 128], sizes = [2, 128], strides = [1, 1]} : vector<2x256xf32> to vector<2x128xf32>
    %c0_114 = arith.constant 0 : index
    %c0_115 = arith.constant 0 : index
    %296 = vector.load %arg4[%c0_114, %c0_115] : memref<1x128xf32, #tpu.memory_space<vmem>>, vector<1x128xf32>
    %297 = vector.broadcast %296 : vector<1x128xf32> to vector<2x128xf32>
    %298 = arith.addf %295, %297 : vector<2x128xf32>
    %299 = arith.negf %294 : vector<2x128xf32>
    %300 = math.exp %299 : vector<2x128xf32>
    %cst_116 = arith.constant 1.000000e+00 : f32
    %301 = vector.broadcast %cst_116 : f32 to vector<2x128xf32>
    %302 = arith.addf %301, %300 : vector<2x128xf32>
    %303 = arith.divf %301, %302 : vector<2x128xf32>
    %cst_117 = arith.constant 2.000000e+00 : f32
    %304 = vector.broadcast %cst_117 : f32 to vector<2x128xf32>
    %305 = arith.mulf %304, %303 : vector<2x128xf32>
    %cst_118 = arith.constant 1.000000e+00 : f32
    %306 = vector.broadcast %cst_118 : f32 to vector<2x128xf32>
    %307 = arith.subf %305, %306 : vector<2x128xf32>
    %c64_i32_119 = arith.constant 64 : i32
    %308 = tpu.dynamic_rotate %307 by %c64_i32_119 dim 1 : vector<2x128xf32>, i32 -> vector<2x128xf32>
    %309 = arith.mulf %303, %308 : vector<2x128xf32>
    %c96_i32_120 = arith.constant 96 : i32
    %310 = tpu.dynamic_rotate %303 by %c96_i32_120 dim 1 : vector<2x128xf32>, i32 -> vector<2x128xf32>
    %311 = arith.mulf %310, %268 : vector<2x128xf32>
    %312 = arith.addf %309, %311 : vector<2x128xf32>
    %c32_i32_121 = arith.constant 32 : i32
    %313 = tpu.dynamic_rotate %303 by %c32_i32_121 dim 1 : vector<2x128xf32>, i32 -> vector<2x128xf32>
    %314 = math.tanh %312 : vector<2x128xf32>
    %315 = arith.mulf %313, %314 : vector<2x128xf32>
    %316 = arith.negf %298 : vector<2x128xf32>
    %317 = math.exp %316 : vector<2x128xf32>
    %cst_122 = arith.constant 1.000000e+00 : f32
    %318 = vector.broadcast %cst_122 : f32 to vector<2x128xf32>
    %319 = arith.addf %318, %317 : vector<2x128xf32>
    %320 = arith.divf %318, %319 : vector<2x128xf32>
    %cst_123 = arith.constant 2.000000e+00 : f32
    %321 = vector.broadcast %cst_123 : f32 to vector<2x128xf32>
    %322 = arith.mulf %321, %320 : vector<2x128xf32>
    %cst_124 = arith.constant 1.000000e+00 : f32
    %323 = vector.broadcast %cst_124 : f32 to vector<2x128xf32>
    %324 = arith.subf %322, %323 : vector<2x128xf32>
    %c64_i32_125 = arith.constant 64 : i32
    %325 = tpu.dynamic_rotate %324 by %c64_i32_125 dim 1 : vector<2x128xf32>, i32 -> vector<2x128xf32>
    %326 = arith.mulf %320, %325 : vector<2x128xf32>
    %c96_i32_126 = arith.constant 96 : i32
    %327 = tpu.dynamic_rotate %320 by %c96_i32_126 dim 1 : vector<2x128xf32>, i32 -> vector<2x128xf32>
    %328 = arith.mulf %327, %285 : vector<2x128xf32>
    %329 = arith.addf %326, %328 : vector<2x128xf32>
    %c32_i32_127 = arith.constant 32 : i32
    %330 = tpu.dynamic_rotate %320 by %c32_i32_127 dim 1 : vector<2x128xf32>, i32 -> vector<2x128xf32>
    %331 = math.tanh %329 : vector<2x128xf32>
    %332 = arith.mulf %330, %331 : vector<2x128xf32>
    %333 = tpu.concatenate %315, %332 in 1 : vector<2x128xf32>, vector<2x128xf32> -> vector<2x256xf32>
    %c0_128 = arith.constant 0 : index
    %c128 = arith.constant 128 : index
    %334 = vector.load %arg3[%c0_128, %c128] : memref<256x256xf32, #tpu.memory_space<vmem>>, vector<256x128xf32>
    %cst_129 = arith.constant dense<0.000000e+00> : vector<2x128xf32>
    %335 = tpu.matmul %333, %334, %cst_129 {dimension_numbers = #tpu.dot_dimension_numbers<[1], [0], [0], [1], [0, 0, 1, 1], [], []>} : vector<2x256xf32>, vector<256x128xf32>, vector<2x128xf32> -> vector<2x128xf32>
    %c0_130 = arith.constant 0 : index
    %c0_131 = arith.constant 0 : index
    %336 = vector.load %arg4[%c0_130, %c0_131] : memref<1x128xf32, #tpu.memory_space<vmem>>, vector<1x128xf32>
    %337 = vector.broadcast %336 : vector<1x128xf32> to vector<2x128xf32>
    %338 = arith.addf %335, %337 : vector<2x128xf32>
    %339 = arith.negf %338 : vector<2x128xf32>
    %340 = math.exp %339 : vector<2x128xf32>
    %cst_132 = arith.constant 1.000000e+00 : f32
    %341 = vector.broadcast %cst_132 : f32 to vector<2x128xf32>
    %342 = arith.addf %341, %340 : vector<2x128xf32>
    %343 = arith.divf %341, %342 : vector<2x128xf32>
    %cst_133 = arith.constant 2.000000e+00 : f32
    %344 = vector.broadcast %cst_133 : f32 to vector<2x128xf32>
    %345 = arith.mulf %344, %343 : vector<2x128xf32>
    %cst_134 = arith.constant 1.000000e+00 : f32
    %346 = vector.broadcast %cst_134 : f32 to vector<2x128xf32>
    %347 = arith.subf %345, %346 : vector<2x128xf32>
    %c64_i32_135 = arith.constant 64 : i32
    %348 = tpu.dynamic_rotate %347 by %c64_i32_135 dim 1 : vector<2x128xf32>, i32 -> vector<2x128xf32>
    %349 = arith.mulf %343, %348 : vector<2x128xf32>
    %c96_i32_136 = arith.constant 96 : i32
    %350 = tpu.dynamic_rotate %343 by %c96_i32_136 dim 1 : vector<2x128xf32>, i32 -> vector<2x128xf32>
    %351 = arith.mulf %350, %329 : vector<2x128xf32>
    %352 = arith.addf %349, %351 : vector<2x128xf32>
    %c32_i32_137 = arith.constant 32 : i32
    %353 = tpu.dynamic_rotate %343 by %c32_i32_137 dim 1 : vector<2x128xf32>, i32 -> vector<2x128xf32>
    %354 = math.tanh %352 : vector<2x128xf32>
    %355 = arith.mulf %353, %354 : vector<2x128xf32>
    %c0_138 = arith.constant 0 : index
    %c0_139 = arith.constant 0 : index
    %356 = vector.load %arg5[%c0_138, %c0_139] : memref<128x128xf32, #tpu.memory_space<vmem>>, vector<128x128xf32>
    %cst_140 = arith.constant dense<0.000000e+00> : vector<2x128xf32>
    %357 = tpu.matmul %355, %356, %cst_140 {dimension_numbers = #tpu.dot_dimension_numbers<[1], [0], [0], [1], [0, 0, 1, 1], [], []>} : vector<2x128xf32>, vector<128x128xf32>, vector<2x128xf32> -> vector<2x128xf32>
    %c0_141 = arith.constant 0 : index
    %c0_142 = arith.constant 0 : index
    %358 = vector.load %arg6[%c0_141, %c0_142] : memref<1x128xf32, #tpu.memory_space<vmem>>, vector<1x128xf32>
    %359 = vector.broadcast %358 : vector<1x128xf32> to vector<2x128xf32>
    %360 = arith.addf %357, %359 : vector<2x128xf32>
    %cst_143 = arith.constant 0.000000e+00 : f32
    %361 = vector.broadcast %cst_143 : f32 to vector<2x128xf32>
    %362 = arith.maximumf %360, %361 : vector<2x128xf32>
    %c0_144 = arith.constant 0 : index
    %c0_145 = arith.constant 0 : index
    %363 = vector.load %arg7[%c0_144, %c0_145] : memref<128x128xf32, #tpu.memory_space<vmem>>, vector<128x128xf32>
    %cst_146 = arith.constant dense<0.000000e+00> : vector<2x128xf32>
    %364 = tpu.matmul %362, %363, %cst_146 {dimension_numbers = #tpu.dot_dimension_numbers<[1], [0], [0], [1], [0, 0, 1, 1], [], []>} : vector<2x128xf32>, vector<128x128xf32>, vector<2x128xf32> -> vector<2x128xf32>
    %c0_147 = arith.constant 0 : index
    %c0_148 = arith.constant 0 : index
    %365 = vector.load %arg8[%c0_147, %c0_148] : memref<1x128xf32, #tpu.memory_space<vmem>>, vector<1x128xf32>
    %366 = vector.broadcast %365 : vector<1x128xf32> to vector<2x128xf32>
    %367 = arith.addf %364, %366 : vector<2x128xf32>
    %c0_149 = arith.constant 0 : index
    %c0_150 = arith.constant 0 : index
    %368 = vector.load %arg9[%c0_149, %c0_150] : memref<2x128xf32, #tpu.memory_space<vmem>>, vector<2x128xf32>
    tpu.vector_store %arg9[%c0_149, %c0_150], %367 {strides = array<i32>} : memref<2x128xf32, #tpu.memory_space<vmem>>, vector<2x128xf32>,
    return
  }
}

</mosaic_0001>

<llo_original>
// kernel: fwd.1
$region0: #{fwd.1}
  #allocation0 [shape = 'u32[]', space=smem, size = 0x4, offset = 0x4, fixed_abs, tag = 'smem constant byte address 0x4 - core index']
  #allocation1 [shape = 'u32[144,128]{1,0:T(1,128)}', space=vmem, size = 0x12000, scoped, tag = 'internal scratch']
  %s0 = inlined_call_operand.vmem [shape: f32[16,512], index: 0, kind: input, shape index: {}]
  %s1 = inlined_call_operand.vmem [shape: f32[512,128], index: 1, kind: input, shape index: {}]
  %s2 = inlined_call_operand.vmem [shape: f32[1,128], index: 2, kind: input, shape index: {}]
  %s3 = inlined_call_operand.vmem [shape: f32[256,256], index: 3, kind: input, shape index: {}]
  %s4 = inlined_call_operand.vmem [shape: f32[1,128], index: 4, kind: input, shape index: {}]
  %s5 = inlined_call_operand.vmem [shape: f32[128,128], index: 5, kind: input, shape index: {}]
  %s6 = inlined_call_operand.vmem [shape: f32[1,128], index: 6, kind: input, shape index: {}]
  %s7 = inlined_call_operand.vmem [shape: f32[128,128], index: 7, kind: input, shape index: {}]
  %s8 = inlined_call_operand.vmem [shape: f32[1,128], index: 8, kind: input, shape index: {}]
  %s9 = inlined_call_operand.hbm [shape: f32[2,128], index: 9, kind: output, shape index: {}]
  %s10 = sld [smem:[#allocation0]]
  $region46: #{fwd.1} parent=0
    _
  %s12 = ssub.s32 1, %s10
  %s13 = scalar_select 0, %s12, %s10
  $region1: #{fwd.1} parent=0
    #allocation2 [shape = 'u8[1024]{0}', space=vmem, size = 0x400, scoped, tag = 'output window, operand 0, single buffered']
    #allocation3 [shape = 's32[1]{0}', space=sflag, size = 0x4, scoped, tag = 'scoped memory for fwd.1']
    %14 = vsyncpa [#allocation3], 0
    // Predicated region
    $region2: #{fwd.1} parent=1 // pred_check
      _
    $region3: #{fwd.1} parent=1 // pred_check_branch
      %16 = sbr.rel (0) target = $region5
    $region4: #{fwd.1} parent=1 // pred_region
      _
    $region5: #{fwd.1} parent=1 // pred_fallthru
      _
    // Predicated region
    $region6: #{fwd.1} parent=1 // pred_check
      _
    $region7: #{fwd.1} parent=1 // pred_check_branch
      %18 = sbr.rel (0) target = $region9
    $region8: #{fwd.1} parent=1 // pred_region
      _
    $region9: #{fwd.1} parent=1 // pred_fallthru
      _
    // Predicated region
    $region10: #{fwd.1} parent=1 // pred_check
      _
    $region11: #{fwd.1} parent=1 // pred_check_branch
      %20 = sbr.rel (0) target = $region13
    $region12: #{fwd.1} parent=1 // pred_region
      _
    $region13: #{fwd.1} parent=1 // pred_fallthru
      _
    // Predicated region
    $region14: #{fwd.1} parent=1 // pred_check
      _
    $region15: #{fwd.1} parent=1 // pred_check_branch
      %22 = sbr.rel (0) target = $region17
    $region16: #{fwd.1} parent=1 // pred_region
      _
    $region17: #{fwd.1} parent=1 // pred_fallthru
      _
    // Predicated region
    $region18: #{fwd.1} parent=1 // pred_check
      _
    $region19: #{fwd.1} parent=1 // pred_check_branch
      %24 = sbr.rel (0) target = $region21
    $region20: #{fwd.1} parent=1 // pred_region
      _
    $region21: #{fwd.1} parent=1 // pred_fallthru
      _
    // Predicated region
    $region22: #{fwd.1} parent=1 // pred_check
      _
    $region23: #{fwd.1} parent=1 // pred_check_branch
      %26 = sbr.rel (0) target = $region25
    $region24: #{fwd.1} parent=1 // pred_region
      _
    $region25: #{fwd.1} parent=1 // pred_fallthru
      _
    // Predicated region
    $region26: #{fwd.1} parent=1 // pred_check
      _
    $region27: #{fwd.1} parent=1 // pred_check_branch
      %28 = sbr.rel (0) target = $region29
    $region28: #{fwd.1} parent=1 // pred_region
      _
    $region29: #{fwd.1} parent=1 // pred_fallthru
      _
    // Predicated region
    $region30: #{fwd.1} parent=1 // pred_check
      _
    $region31: #{fwd.1} parent=1 // pred_check_branch
      %30 = sbr.rel (0) target = $region33
    $region32: #{fwd.1} parent=1 // pred_region
      _
    $region33: #{fwd.1} parent=1 // pred_fallthru
      _
    // Predicated region
    $region34: #{fwd.1} parent=1 // pred_check
      _
    $region35: #{fwd.1} parent=1 // pred_check_branch
      %32 = sbr.rel (0) target = $region37
    $region36: #{fwd.1} parent=1 // pred_region
      _
    $region37: #{fwd.1} parent=1 // pred_fallthru
      _
    %v33 = vld [vmem:[%s0] sm:$0xff]
    %v34 = vld [vmem:[%s0 + $0x8] sm:$0xff]
    %v35 = vld [vmem:[%s0 + $0x10] sm:$0xff]
    %v36 = vld [vmem:[%s0 + $0x18] sm:$0xff]
    %v37 = vld [vmem:[%s0 + $0x20] sm:$0xff]
    %v38 = vld [vmem:[%s0 + $0x28] sm:$0xff]
    %v39 = vld [vmem:[%s0 + $0x30] sm:$0xff]
    %v40 = vld [vmem:[%s0 + $0x38] sm:$0xff]
    %v41 = vld [vmem:[%s1] sm:$0xff]
    %v42 = vld [vmem:[%s1 + $0x8] sm:$0xff]
    %v43 = vld [vmem:[%s1 + $0x10] sm:$0xff]
    %v44 = vld [vmem:[%s1 + $0x18] sm:$0xff]
    %v45 = vld [vmem:[%s1 + $0x20] sm:$0xff]
    %v46 = vld [vmem:[%s1 + $0x28] sm:$0xff]
    %v47 = vld [vmem:[%s1 + $0x30] sm:$0xff]
    %v48 = vld [vmem:[%s1 + $0x38] sm:$0xff]
    %v49 = vld [vmem:[%s1 + $0x40] sm:$0xff]
    %v50 = vld [vmem:[%s1 + $0x48] sm:$0xff]
    %v51 = vld [vmem:[%s1 + $0x50] sm:$0xff]
    %v52 = vld [vmem:[%s1 + $0x58] sm:$0xff]
    %v53 = vld [vmem:[%s1 + $0x60] sm:$0xff]
    %v54 = vld [vmem:[%s1 + $0x68] sm:$0xff]
    %v55 = vld [vmem:[%s1 + $0x70] sm:$0xff]
    %v56 = vld [vmem:[%s1 + $0x78] sm:$0xff]
    %v57 = vld [vmem:[%s1 + $0x80] sm:$0xff]
    %v58 = vld [vmem:[%s1 + $0x88] sm:$0xff]
    %v59 = vld [vmem:[%s1 + $0x90] sm:$0xff]
    %v60 = vld [vmem:[%s1 + $0x98] sm:$0xff]
    %v61 = vld [vmem:[%s1 + $0xa0] sm:$0xff]
    %v62 = vld [vmem:[%s1 + $0xa8] sm:$0xff]
    %v63 = vld [vmem:[%s1 + $0xb0] sm:$0xff]
    %v64 = vld [vmem:[%s1 + $0xb8] sm:$0xff]
    %v65 = vld [vmem:[%s1 + $0xc0] sm:$0xff]
    %v66 = vld [vmem:[%s1 + $0xc8] sm:$0xff]
    %v67 = vld [vmem:[%s1 + $0xd0] sm:$0xff]
    %v68 = vld [vmem:[%s1 + $0xd8] sm:$0xff]
    %v69 = vld [vmem:[%s1 + $0xe0] sm:$0xff]
    %v70 = vld [vmem:[%s1 + $0xe8] sm:$0xff]
    %v71 = vld [vmem:[%s1 + $0xf0] sm:$0xff]
    %v72 = vld [vmem:[%s1 + $0xf8] sm:$0xff]
    %v73 = vld [vmem:[%s1 + $0x100] sm:$0xff]
    %v74 = vld [vmem:[%s1 + $0x108] sm:$0xff]
    %v75 = vld [vmem:[%s1 + $0x110] sm:$0xff]
    %v76 = vld [vmem:[%s1 + $0x118] sm:$0xff]
    %v77 = vld [vmem:[%s1 + $0x120] sm:$0xff]
    %v78 = vld [vmem:[%s1 + $0x128] sm:$0xff]
    %v79 = vld [vmem:[%s1 + $0x130] sm:$0xff]
    %v80 = vld [vmem:[%s1 + $0x138] sm:$0xff]
    %v81 = vld [vmem:[%s1 + $0x140] sm:$0xff]
    %v82 = vld [vmem:[%s1 + $0x148] sm:$0xff]
    %v83 = vld [vmem:[%s1 + $0x150] sm:$0xff]
    %v84 = vld [vmem:[%s1 + $0x158] sm:$0xff]
    %v85 = vld [vmem:[%s1 + $0x160] sm:$0xff]
    %v86 = vld [vmem:[%s1 + $0x168] sm:$0xff]
    %v87 = vld [vmem:[%s1 + $0x170] sm:$0xff]
    %v88 = vld [vmem:[%s1 + $0x178] sm:$0xff]
    %v89 = vld [vmem:[%s1 + $0x180] sm:$0xff]
    %v90 = vld [vmem:[%s1 + $0x188] sm:$0xff]
    %v91 = vld [vmem:[%s1 + $0x190] sm:$0xff]
    %v92 = vld [vmem:[%s1 + $0x198] sm:$0xff]
    %v93 = vld [vmem:[%s1 + $0x1a0] sm:$0xff]
    %v94 = vld [vmem:[%s1 + $0x1a8] sm:$0xff]
    %v95 = vld [vmem:[%s1 + $0x1b0] sm:$0xff]
    %v96 = vld [vmem:[%s1 + $0x1b8] sm:$0xff]
    %v97 = vld [vmem:[%s1 + $0x1c0] sm:$0xff]
    %v98 = vld [vmem:[%s1 + $0x1c8] sm:$0xff]
    %v99 = vld [vmem:[%s1 + $0x1d0] sm:$0xff]
    %v100 = vld [vmem:[%s1 + $0x1d8] sm:$0xff]
    %v101 = vld [vmem:[%s1 + $0x1e0] sm:$0xff]
    %v102 = vld [vmem:[%s1 + $0x1e8] sm:$0xff]
    %v103 = vld [vmem:[%s1 + $0x1f0] sm:$0xff]
    %v104 = vld [vmem:[%s1 + $0x1f8] sm:$0xff]
    %v105 = vld [vmem:[%s2] sm:$0x1]
    %v107 = vlaneseq
    %v108 = vshrl.u32 %v107, 7
    %v109 = vsub.s32 0, %v108
    %v110 = vrot.slane %v105, %v109
    %112 = vmatprep.subr.mxu0 0.0
    %113 = vmatpush1.msra.mxu0 %v41
    %114 = vmatprep.subr.mxu0 0.0
    %115 = vmatpush1.msra.mxu0 %v42
    %116 = vmatprep.subr.mxu0 0.0
    %117 = vmatpush1.msra.mxu0 %v43
    %118 = vmatprep.subr.mxu0 0.0
    %119 = vmatpush1.msra.mxu0 %v44
    %120 = vmatprep.subr.mxu0 0.0
    %121 = vmatpush1.msra.mxu0 %v45
    %122 = vmatprep.subr.mxu0 0.0
    %123 = vmatpush1.msra.mxu0 %v46
    %124 = vmatprep.subr.mxu0 0.0
    %125 = vmatpush1.msra.mxu0 %v47
    %126 = vmatprep.subr.mxu0 0.0
    %127 = vmatpush1.msra.mxu0 %v48
    %128 = vmatprep.subr.mxu0 0.0
    %129 = vmatpush1.msra.mxu0 %v49
    %130 = vmatprep.subr.mxu0 0.0
    %131 = vmatpush1.msra.mxu0 %v50
    %132 = vmatprep.subr.mxu0 0.0
    %133 = vmatpush1.msra.mxu0 %v51
    %134 = vmatprep.subr.mxu0 0.0
    %135 = vmatpush1.msra.mxu0 %v52
    %136 = vmatprep.subr.mxu0 0.0
    %137 = vmatpush1.msra.mxu0 %v53
    %138 = vmatprep.subr.mxu0 0.0
    %139 = vmatpush1.msra.mxu0 %v54
    %140 = vmatprep.subr.mxu0 0.0
    %141 = vmatpush1.msra.mxu0 %v55
    %142 = vmatprep.subr.mxu0 0.0
    %143 = vmatpush1.msra.mxu0 %v56
    %144 = vmatprep.subr.mxu0 0.0
    %145 = vmatpush1.msra.mxu0 %v57
    %146 = vmatprep.subr.mxu0 0.0
    %147 = vmatpush1.msra.mxu0 %v58
    %148 = vmatprep.subr.mxu0 0.0
    %149 = vmatpush1.msra.mxu0 %v59
    %150 = vmatprep.subr.mxu0 0.0
    %151 = vmatpush1.msra.mxu0 %v60
    %152 = vmatprep.subr.mxu0 0.0
    %153 = vmatpush1.msra.mxu0 %v61
    %154 = vmatprep.subr.mxu0 0.0
    %155 = vmatpush1.msra.mxu0 %v62
    %156 = vmatprep.subr.mxu0 0.0
    %157 = vmatpush1.msra.mxu0 %v63
    %158 = vmatprep.subr.mxu0 0.0
    %159 = vmatpush1.msra.mxu0 %v64
    %160 = vmatprep.subr.mxu0 0.0
    %161 = vmatpush1.msra.mxu0 %v65
    %162 = vmatprep.subr.mxu0 0.0
    %163 = vmatpush1.msra.mxu0 %v66
    %164 = vmatprep.subr.mxu0 0.0
    %165 = vmatpush1.msra.mxu0 %v67
    %166 = vmatprep.subr.mxu0 0.0
    %167 = vmatpush1.msra.mxu0 %v68
    %168 = vmatprep.subr.mxu0 0.0
    %169 = vmatpush1.msra.mxu0 %v69
    %170 = vmatprep.subr.mxu0 0.0
    %171 = vmatpush1.msra.mxu0 %v70
    %172 = vmatprep.subr.mxu0 0.0
    %173 = vmatpush1.msra.mxu0 %v71
    %174 = vmatprep.subr.mxu0 0.0
    %175 = vmatpush1.msra.mxu0 %v72
    %176 = vmatprep.mubr.f32.mxu0 %v34
    %177 = vmatmul.mubr.f32.gmra.mrb[0].mxu0 %v33
    %v178 = vpop.f32.mrb[0].mxu0
    %v179 = vadd.f32 %v110, %v178
    %v180 = vpop.f32.mrb[0].mxu0
    %181 = vmatprep.mubr.f32.mxu0 %v38
    %182 = vmatmul.mubr.f32.gmra.mrb[0].mxu0 %v37
    %v183 = vpop.f32.mrb[0].mxu0
    %v184 = vadd.f32 %v110, %v183
    %v185 = vpop.f32.mrb[0].mxu0
    %186 = vdwg.mxu0
    %187 = vmatprep.subr.mxu0 0.0
    %188 = vmatpush1.msra.mxu0 %v73
    %189 = vmatprep.subr.mxu0 0.0
    %190 = vmatpush1.msra.mxu0 %v74
    %191 = vmatprep.subr.mxu0 0.0
    %192 = vmatpush1.msra.mxu0 %v75
    %193 = vmatprep.subr.mxu0 0.0
    %194 = vmatpush1.msra.mxu0 %v76
    %195 = vmatprep.subr.mxu0 0.0
    %196 = vmatpush1.msra.mxu0 %v77
    %197 = vmatprep.subr.mxu0 0.0
    %198 = vmatpush1.msra.mxu0 %v78
    %199 = vmatprep.subr.mxu0 0.0
    %200 = vmatpush1.msra.mxu0 %v79
    %201 = vmatprep.subr.mxu0 0.0
    %202 = vmatpush1.msra.mxu0 %v80
    %203 = vmatprep.subr.mxu0 0.0
    %204 = vmatpush1.msra.mxu0 %v81
    %205 = vmatprep.subr.mxu0 0.0
    %206 = vmatpush1.msra.mxu0 %v82
    %207 = vmatprep.subr.mxu0 0.0
    %208 = vmatpush1.msra.mxu0 %v83
    %209 = vmatprep.subr.mxu0 0.0
    %210 = vmatpush1.msra.mxu0 %v84
    %211 = vmatprep.subr.mxu0 0.0
    %212 = vmatpush1.msra.mxu0 %v85
    %213 = vmatprep.subr.mxu0 0.0
    %214 = vmatpush1.msra.mxu0 %v86
    %215 = vmatprep.subr.mxu0 0.0
    %216 = vmatpush1.msra.mxu0 %v87
    %217 = vmatprep.subr.mxu0 0.0
    %218 = vmatpush1.msra.mxu0 %v88
    %219 = vmatprep.subr.mxu0 0.0
    %220 = vmatpush1.msra.mxu0 %v89
    %221 = vmatprep.subr.mxu0 0.0
    %222 = vmatpush1.msra.mxu0 %v90
    %223 = vmatprep.subr.mxu0 0.0
    %224 = vmatpush1.msra.mxu0 %v91
    %225 = vmatprep.subr.mxu0 0.0
    %226 = vmatpush1.msra.mxu0 %v92
    %227 = vmatprep.subr.mxu0 0.0
    %228 = vmatpush1.msra.mxu0 %v93
    %229 = vmatprep.subr.mxu0 0.0
    %230 = vmatpush1.msra.mxu0 %v94
    %231 = vmatprep.subr.mxu0 0.0
    %232 = vmatpush1.msra.mxu0 %v95
    %233 = vmatprep.subr.mxu0 0.0
    %234 = vmatpush1.msra.mxu0 %v96
    %235 = vmatprep.subr.mxu0 0.0
    %236 = vmatpush1.msra.mxu0 %v97
    %237 = vmatprep.subr.mxu0 0.0
    %238 = vmatpush1.msra.mxu0 %v98
    %239 = vmatprep.subr.mxu0 0.0
    %240 = vmatpush1.msra.mxu0 %v99
    %241 = vmatprep.subr.mxu0 0.0
    %242 = vmatpush1.msra.mxu0 %v100
    %243 = vmatprep.subr.mxu0 0.0
    %244 = vmatpush1.msra.mxu0 %v101
    %245 = vmatprep.subr.mxu0 0.0
    %246 = vmatpush1.msra.mxu0 %v102
    %247 = vmatprep.subr.mxu0 0.0
    %248 = vmatpush1.msra.mxu0 %v103
    %249 = vmatprep.subr.mxu0 0.0
    %250 = vmatpush1.msra.mxu0 %v104
    %251 = vmatprep.mubr.f32.mxu0 %v36
    %252 = vmatmul.mubr.f32.gmra.mrb[0].mxu0 %v35
    %v253 = vpop.f32.mrb[0].mxu0
    %v254 = vadd.f32 %v179, %v253
    %v255 = vpop.f32.mrb[0].mxu0
    %256 = vmatprep.mubr.f32.mxu0 %v40
    %257 = vmatmul.mubr.f32.gmra.mrb[0].mxu0 %v39
    %v258 = vpop.f32.mrb[0].mxu0
    %v259 = vadd.f32 %v184, %v258
    %v260 = vpop.f32.mrb[0].mxu0
    %261 = vdwg.mxu0
    %v262 = vxor.u32 %v254, 2147483648
    %v263 = vmul.f32 %v262, 1.442695
    %v264 = vpow.pop %v263
    %v265 = vadd.f32 %v264, 1.0
    %v266 = vrcp.pop %v265
    %v267 = vmul.f32 1.0, %v266
    %v268 = vmul.f32 %v267, 2.0
    %v269 = vsub.f32 %v268, 1.0
    %270 = vrot.lane.b32.xlu0 %v269, 64
    %v271 = vpop.permute.xlu0 %270
    %v272 = vmul.f32 %v267, %v271
    %273 = vrot.lane.b32.xlu0 %v267, 96
    %v274 = vpop.permute.xlu0 %273
    %v275 = vmul.f32 %v274, 0.0
    %v276 = vadd.f32 %v272, %v275
    %277 = vrot.lane.b32.xlu0 %v267, 32
    %v278 = vpop.permute.xlu0 %277
    %v279 = vtanh.pop %v276
    %v280 = vmul.f32 %v278, %v279
    %v281 = vld [vmem:[%s3] sm:$0xff]
    %v282 = vld [vmem:[%s3 + $0x8] sm:$0xff]
    %v283 = vld [vmem:[%s3 + $0x10] sm:$0xff]
    %v284 = vld [vmem:[%s3 + $0x18] sm:$0xff]
    %v285 = vld [vmem:[%s3 + $0x20] sm:$0xff]
    %v286 = vld [vmem:[%s3 + $0x28] sm:$0xff]
    %v287 = vld [vmem:[%s3 + $0x30] sm:$0xff]
    %v288 = vld [vmem:[%s3 + $0x38] sm:$0xff]
    %v289 = vld [vmem:[%s3 + $0x40] sm:$0xff]
    %v290 = vld [vmem:[%s3 + $0x48] sm:$0xff]
    %v291 = vld [vmem:[%s3 + $0x50] sm:$0xff]
    %v292 = vld [vmem:[%s3 + $0x58] sm:$0xff]
    %v293 = vld [vmem:[%s3 + $0x60] sm:$0xff]
    %v294 = vld [vmem:[%s3 + $0x68] sm:$0xff]
    %v295 = vld [vmem:[%s3 + $0x70] sm:$0xff]
    %v296 = vld [vmem:[%s3 + $0x78] sm:$0xff]
    %v297 = vld [vmem:[%s3 + $0x80] sm:$0xff]
    %v298 = vld [vmem:[%s3 + $0x88] sm:$0xff]
    %v299 = vld [vmem:[%s3 + $0x90] sm:$0xff]
    %v300 = vld [vmem:[%s3 + $0x98] sm:$0xff]
    %v301 = vld [vmem:[%s3 + $0xa0] sm:$0xff]
    %v302 = vld [vmem:[%s3 + $0xa8] sm:$0xff]
    %v303 = vld [vmem:[%s3 + $0xb0] sm:$0xff]
    %v304 = vld [vmem:[%s3 + $0xb8] sm:$0xff]
    %v305 = vld [vmem:[%s3 + $0xc0] sm:$0xff]
    %v306 = vld [vmem:[%s3 + $0xc8] sm:$0xff]
    %v307 = vld [vmem:[%s3 + $0xd0] sm:$0xff]
    %v308 = vld [vmem:[%s3 + $0xd8] sm:$0xff]
    %v309 = vld [vmem:[%s3 + $0xe0] sm:$0xff]
    %v310 = vld [vmem:[%s3 + $0xe8] sm:$0xff]
    %v311 = vld [vmem:[%s3 + $0xf0] sm:$0xff]
    %v312 = vld [vmem:[%s3 + $0xf8] sm:$0xff]
    %v313 = vld [vmem:[%s3 + $0x100] sm:$0xff]
    %v314 = vld [vmem:[%s3 + $0x108] sm:$0xff]
    %v315 = vld [vmem:[%s3 + $0x110] sm:$0xff]
    %v316 = vld [vmem:[%s3 + $0x118] sm:$0xff]
    %v317 = vld [vmem:[%s3 + $0x120] sm:$0xff]
    %v318 = vld [vmem:[%s3 + $0x128] sm:$0xff]
    %v319 = vld [vmem:[%s3 + $0x130] sm:$0xff]
    %v320 = vld [vmem:[%s3 + $0x138] sm:$0xff]
    %v321 = vld [vmem:[%s3 + $0x140] sm:$0xff]
    %v322 = vld [vmem:[%s3 + $0x148] sm:$0xff]
    %v323 = vld [vmem:[%s3 + $0x150] sm:$0xff]
    %v324 = vld [vmem:[%s3 + $0x158] sm:$0xff]
    %v325 = vld [vmem:[%s3 + $0x160] sm:$0xff]
    %v326 = vld [vmem:[%s3 + $0x168] sm:$0xff]
    %v327 = vld [vmem:[%s3 + $0x170] sm:$0xff]
    %v328 = vld [vmem:[%s3 + $0x178] sm:$0xff]
    %v329 = vld [vmem:[%s3 + $0x180] sm:$0xff]
    %v330 = vld [vmem:[%s3 + $0x188] sm:$0xff]
    %v331 = vld [vmem:[%s3 + $0x190] sm:$0xff]
    %v332 = vld [vmem:[%s3 + $0x198] sm:$0xff]
    %v333 = vld [vmem:[%s3 + $0x1a0] sm:$0xff]
    %v334 = vld [vmem:[%s3 + $0x1a8] sm:$0xff]
    %v335 = vld [vmem:[%s3 + $0x1b0] sm:$0xff]
    %v336 = vld [vmem:[%s3 + $0x1b8] sm:$0xff]
    %v337 = vld [vmem:[%s3 + $0x1c0] sm:$0xff]
    %v338 = vld [vmem:[%s3 + $0x1c8] sm:$0xff]
    %v339 = vld [vmem:[%s3 + $0x1d0] sm:$0xff]
    %v340 = vld [vmem:[%s3 + $0x1d8] sm:$0xff]
    %v341 = vld [vmem:[%s3 + $0x1e0] sm:$0xff]
    %v342 = vld [vmem:[%s3 + $0x1e8] sm:$0xff]
    %v343 = vld [vmem:[%s3 + $0x1f0] sm:$0xff]
    %v344 = vld [vmem:[%s3 + $0x1f8] sm:$0xff]
    %345 = vmatprep.subr.mxu0 %v282
    %346 = vmatpush1.msra.mxu0 %v281
    %347 = vmatprep.subr.mxu0 %v284
    %348 = vmatpush1.msra.mxu0 %v283
    %349 = vmatprep.subr.mxu0 %v286
    %350 = vmatpush1.msra.mxu0 %v285
    %351 = vmatprep.subr.mxu0 %v288
    %352 = vmatpush1.msra.mxu0 %v287
    %353 = vmatprep.subr.mxu0 %v290
    %354 = vmatpush1.msra.mxu0 %v289
    %355 = vmatprep.subr.mxu0 %v292
    %356 = vmatpush1.msra.mxu0 %v291
    %357 = vmatprep.subr.mxu0 %v294
    %358 = vmatpush1.msra.mxu0 %v293
    %359 = vmatprep.subr.mxu0 %v296
    %360 = vmatpush1.msra.mxu0 %v295
    %361 = vmatprep.subr.mxu0 %v298
    %362 = vmatpush1.msra.mxu0 %v297
    %363 = vmatprep.subr.mxu0 %v300
    %364 = vmatpush1.msra.mxu0 %v299
    %365 = vmatprep.subr.mxu0 %v302
    %366 = vmatpush1.msra.mxu0 %v301
    %367 = vmatprep.subr.mxu0 %v304
    %368 = vmatpush1.msra.mxu0 %v303
    %369 = vmatprep.subr.mxu0 %v306
    %370 = vmatpush1.msra.mxu0 %v305
    %371 = vmatprep.subr.mxu0 %v308
    %372 = vmatpush1.msra.mxu0 %v307
    %373 = vmatprep.subr.mxu0 %v310
    %374 = vmatpush1.msra.mxu0 %v309
    %375 = vmatprep.subr.mxu0 %v312
    %376 = vmatpush1.msra.mxu0 %v311
    %377 = vmatprep.subr.mxu0 %v314
    %378 = vmatpush1.msra.mxu0 %v313
    %379 = vmatprep.subr.mxu0 %v316
    %380 = vmatpush1.msra.mxu0 %v315
    %381 = vmatprep.subr.mxu0 %v318
    %382 = vmatpush1.msra.mxu0 %v317
    %383 = vmatprep.subr.mxu0 %v320
    %384 = vmatpush1.msra.mxu0 %v319
    %385 = vmatprep.subr.mxu0 %v322
    %386 = vmatpush1.msra.mxu0 %v321
    %387 = vmatprep.subr.mxu0 %v324
    %388 = vmatpush1.msra.mxu0 %v323
    %389 = vmatprep.subr.mxu0 %v326
    %390 = vmatpush1.msra.mxu0 %v325
    %391 = vmatprep.subr.mxu0 %v328
    %392 = vmatpush1.msra.mxu0 %v327
    %393 = vmatprep.subr.mxu0 %v330
    %394 = vmatpush1.msra.mxu0 %v329
    %395 = vmatprep.subr.mxu0 %v332
    %396 = vmatpush1.msra.mxu0 %v331
    %397 = vmatprep.subr.mxu0 %v334
    %398 = vmatpush1.msra.mxu0 %v333
    %399 = vmatprep.subr.mxu0 %v336
    %400 = vmatpush1.msra.mxu0 %v335
    %401 = vmatprep.subr.mxu0 %v338
    %402 = vmatpush1.msra.mxu0 %v337
    %403 = vmatprep.subr.mxu0 %v340
    %404 = vmatpush1.msra.mxu0 %v339
    %405 = vmatprep.subr.mxu0 %v342
    %406 = vmatpush1.msra.mxu0 %v341
    %407 = vmatprep.subr.mxu0 %v344
    %408 = vmatpush1.msra.mxu0 %v343
    %409 = vmatprep.mubr.f32.mxu0 0.0
    %410 = vmatmul.mubr.f32.gmra.mrb[0].mxu0 %v280
    %v411 = vpop.f32.mrb[0].mxu0
    %v412 = vadd.f32 0.0, %v411
    %v413 = vpop.f32.mrb[0].mxu0
    %v414 = vadd.f32 0.0, %v413
    %415 = vdwg.mxu0
    %v417 = vrot.slane %v254, 2
    %v419 = vadd.f32 %v412, %v417
    %v420 = vld [vmem:[%s4] sm:$0x1]
    %v422 = vlaneseq
    %v423 = vshrl.u32 %v422, 7
    %v424 = vsub.s32 0, %v423
    %v425 = vrot.slane %v420, %v424
    %v427 = vadd.f32 %v414, %v425
    %v428 = vxor.u32 %v419, 2147483648
    %v429 = vmul.f32 %v428, 1.442695
    %v430 = vpow.pop %v429
    %v431 = vadd.f32 %v430, 1.0
    %v432 = vrcp.pop %v431
    %v433 = vmul.f32 1.0, %v432
    %v434 = vmul.f32 %v433, 2.0
    %v435 = vsub.f32 %v434, 1.0
    %436 = vrot.lane.b32.xlu0 %v435, 64
    %v437 = vpop.permute.xlu0 %436
    %v438 = vmul.f32 %v433, %v437
    %439 = vrot.lane.b32.xlu0 %v433, 96
    %v440 = vpop.permute.xlu0 %439
    %v441 = vmul.f32 %v440, %v276
    %v442 = vadd.f32 %v438, %v441
    %443 = vrot.lane.b32.xlu0 %v433, 32
    %v444 = vpop.permute.xlu0 %443
    %v445 = vtanh.pop %v442
    %v446 = vmul.f32 %v444, %v445
    %v447 = vxor.u32 %v427, 2147483648
    %v448 = vmul.f32 %v447, 1.442695
    %v449 = vpow.pop %v448
    %v450 = vadd.f32 %v449, 1.0
    %v451 = vrcp.pop %v450
    %v452 = vmul.f32 1.0, %v451
    %v453 = vmul.f32 %v452, 2.0
    %v454 = vsub.f32 %v453, 1.0
    %455 = vrot.lane.b32.xlu0 %v454, 64
    %v456 = vpop.permute.xlu0 %455
    %v457 = vmul.f32 %v452, %v456
    %458 = vrot.lane.b32.xlu0 %v452, 96
    %v459 = vpop.permute.xlu0 %458
    %v460 = vmul.f32 %v459, 0.0
    %v461 = vadd.f32 %v457, %v460
    %462 = vrot.lane.b32.xlu0 %v452, 32
    %v463 = vpop.permute.xlu0 %462
    %v464 = vtanh.pop %v461
    %v465 = vmul.f32 %v463, %v464
    %466 = vmatprep.subr.mxu0 %v282
    %467 = vmatpush1.msra.mxu0 %v281
    %468 = vmatprep.subr.mxu0 %v284
    %469 = vmatpush1.msra.mxu0 %v283
    %470 = vmatprep.subr.mxu0 %v286
    %471 = vmatpush1.msra.mxu0 %v285
    %472 = vmatprep.subr.mxu0 %v288
    %473 = vmatpush1.msra.mxu0 %v287
    %474 = vmatprep.subr.mxu0 %v290
    %475 = vmatpush1.msra.mxu0 %v289
    %476 = vmatprep.subr.mxu0 %v292
    %477 = vmatpush1.msra.mxu0 %v291
    %478 = vmatprep.subr.mxu0 %v294
    %479 = vmatpush1.msra.mxu0 %v293
    %480 = vmatprep.subr.mxu0 %v296
    %481 = vmatpush1.msra.mxu0 %v295
    %482 = vmatprep.subr.mxu0 %v298
    %483 = vmatpush1.msra.mxu0 %v297
    %484 = vmatprep.subr.mxu0 %v300
    %485 = vmatpush1.msra.mxu0 %v299
    %486 = vmatprep.subr.mxu0 %v302
    %487 = vmatpush1.msra.mxu0 %v301
    %488 = vmatprep.subr.mxu0 %v304
    %489 = vmatpush1.msra.mxu0 %v303
    %490 = vmatprep.subr.mxu0 %v306
    %491 = vmatpush1.msra.mxu0 %v305
    %492 = vmatprep.subr.mxu0 %v308
    %493 = vmatpush1.msra.mxu0 %v307
    %494 = vmatprep.subr.mxu0 %v310
    %495 = vmatpush1.msra.mxu0 %v309
    %496 = vmatprep.subr.mxu0 %v312
    %497 = vmatpush1.msra.mxu0 %v311
    %498 = vmatprep.subr.mxu0 %v314
    %499 = vmatpush1.msra.mxu0 %v313
    %500 = vmatprep.subr.mxu0 %v316
    %501 = vmatpush1.msra.mxu0 %v315
    %502 = vmatprep.subr.mxu0 %v318
    %503 = vmatpush1.msra.mxu0 %v317
    %504 = vmatprep.subr.mxu0 %v320
    %505 = vmatpush1.msra.mxu0 %v319
    %506 = vmatprep.subr.mxu0 %v322
    %507 = vmatpush1.msra.mxu0 %v321
    %508 = vmatprep.subr.mxu0 %v324
    %509 = vmatpush1.msra.mxu0 %v323
    %510 = vmatprep.subr.mxu0 %v326
    %511 = vmatpush1.msra.mxu0 %v325
    %512 = vmatprep.subr.mxu0 %v328
    %513 = vmatpush1.msra.mxu0 %v327
    %514 = vmatprep.subr.mxu0 %v330
    %515 = vmatpush1.msra.mxu0 %v329
    %516 = vmatprep.subr.mxu0 %v332
    %517 = vmatpush1.msra.mxu0 %v331
    %518 = vmatprep.subr.mxu0 %v334
    %519 = vmatpush1.msra.mxu0 %v333
    %520 = vmatprep.subr.mxu0 %v336
    %521 = vmatpush1.msra.mxu0 %v335
    %522 = vmatprep.subr.mxu0 %v338
    %523 = vmatpush1.msra.mxu0 %v337
    %524 = vmatprep.subr.mxu0 %v340
    %525 = vmatpush1.msra.mxu0 %v339
    %526 = vmatprep.subr.mxu0 %v342
    %527 = vmatpush1.msra.mxu0 %v341
    %528 = vmatprep.subr.mxu0 %v344
    %529 = vmatpush1.msra.mxu0 %v343
    %530 = vmatprep.mubr.f32.mxu0 %v465
    %531 = vmatmul.mubr.f32.gmra.mrb[0].mxu0 %v446
    %v532 = vpop.f32.mrb[0].mxu0
    %v533 = vadd.f32 0.0, %v532
    %v534 = vpop.f32.mrb[0].mxu0
    %v535 = vadd.f32 0.0, %v534
    %536 = vdwg.mxu0
    %v537 = vrot.slane %v254, 4
    %v539 = vadd.f32 %v533, %v537
    %v540 = vadd.f32 %v535, %v425
    %v541 = vxor.u32 %v539, 2147483648
    %v542 = vmul.f32 %v541, 1.442695
    %v543 = vpow.pop %v542
    %v544 = vadd.f32 %v543, 1.0
    %v545 = vrcp.pop %v544
    %v546 = vmul.f32 1.0, %v545
    %v547 = vmul.f32 %v546, 2.0
    %v548 = vsub.f32 %v547, 1.0
    %549 = vrot.lane.b32.xlu0 %v548, 64
    %v550 = vpop.permute.xlu0 %549
    %v551 = vmul.f32 %v546, %v550
    %552 = vrot.lane.b32.xlu0 %v546, 96
    %v553 = vpop.permute.xlu0 %552
    %v554 = vmul.f32 %v553, %v442
    %v555 = vadd.f32 %v551, %v554
    %556 = vrot.lane.b32.xlu0 %v546, 32
    %v557 = vpop.permute.xlu0 %556
    %v558 = vtanh.pop %v555
    %v559 = vmul.f32 %v557, %v558
    %v560 = vxor.u32 %v540, 2147483648
    %v561 = vmul.f32 %v560, 1.442695
    %v562 = vpow.pop %v561
    %v563 = vadd.f32 %v562, 1.0
    %v564 = vrcp.pop %v563
    %v565 = vmul.f32 1.0, %v564
    %v566 = vmul.f32 %v565, 2.0
    %v567 = vsub.f32 %v566, 1.0
    %568 = vrot.lane.b32.xlu0 %v567, 64
    %v569 = vpop.permute.xlu0 %568
    %v570 = vmul.f32 %v565, %v569
    %571 = vrot.lane.b32.xlu0 %v565, 96
    %v572 = vpop.permute.xlu0 %571
    %v573 = vmul.f32 %v572, %v461
    %v574 = vadd.f32 %v570, %v573
    %575 = vrot.lane.b32.xlu0 %v565, 32
    %v576 = vpop.permute.xlu0 %575
    %v577 = vtanh.pop %v574
    %v578 = vmul.f32 %v576, %v577
    %579 = vmatprep.subr.mxu0 %v282
    %580 = vmatpush1.msra.mxu0 %v281
    %581 = vmatprep.subr.mxu0 %v284
    %582 = vmatpush1.msra.mxu0 %v283
    %583 = vmatprep.subr.mxu0 %v286
    %584 = vmatpush1.msra.mxu0 %v285
    %585 = vmatprep.subr.mxu0 %v288
    %586 = vmatpush1.msra.mxu0 %v287
    %587 = vmatprep.subr.mxu0 %v290
    %588 = vmatpush1.msra.mxu0 %v289
    %589 = vmatprep.subr.mxu0 %v292
    %590 = vmatpush1.msra.mxu0 %v291
    %591 = vmatprep.subr.mxu0 %v294
    %592 = vmatpush1.msra.mxu0 %v293
    %593 = vmatprep.subr.mxu0 %v296
    %594 = vmatpush1.msra.mxu0 %v295
    %595 = vmatprep.subr.mxu0 %v298
    %596 = vmatpush1.msra.mxu0 %v297
    %597 = vmatprep.subr.mxu0 %v300
    %598 = vmatpush1.msra.mxu0 %v299
    %599 = vmatprep.subr.mxu0 %v302
    %600 = vmatpush1.msra.mxu0 %v301
    %601 = vmatprep.subr.mxu0 %v304
    %602 = vmatpush1.msra.mxu0 %v303
    %603 = vmatprep.subr.mxu0 %v306
    %604 = vmatpush1.msra.mxu0 %v305
    %605 = vmatprep.subr.mxu0 %v308
    %606 = vmatpush1.msra.mxu0 %v307
    %607 = vmatprep.subr.mxu0 %v310
    %608 = vmatpush1.msra.mxu0 %v309
    %609 = vmatprep.subr.mxu0 %v312
    %610 = vmatpush1.msra.mxu0 %v311
    %611 = vmatprep.subr.mxu0 %v314
    %612 = vmatpush1.msra.mxu0 %v313
    %613 = vmatprep.subr.mxu0 %v316
    %614 = vmatpush1.msra.mxu0 %v315
    %615 = vmatprep.subr.mxu0 %v318
    %616 = vmatpush1.msra.mxu0 %v317
    %617 = vmatprep.subr.mxu0 %v320
    %618 = vmatpush1.msra.mxu0 %v319
    %619 = vmatprep.subr.mxu0 %v322
    %620 = vmatpush1.msra.mxu0 %v321
    %621 = vmatprep.subr.mxu0 %v324
    %622 = vmatpush1.msra.mxu0 %v323
    %623 = vmatprep.subr.mxu0 %v326
    %624 = vmatpush1.msra.mxu0 %v325
    %625 = vmatprep.subr.mxu0 %v328
    %626 = vmatpush1.msra.mxu0 %v327
    %627 = vmatprep.subr.mxu0 %v330
    %628 = vmatpush1.msra.mxu0 %v329
    %629 = vmatprep.subr.mxu0 %v332
    %630 = vmatpush1.msra.mxu0 %v331
    %631 = vmatprep.subr.mxu0 %v334
    %632 = vmatpush1.msra.mxu0 %v333
    %633 = vmatprep.subr.mxu0 %v336
    %634 = vmatpush1.msra.mxu0 %v335
    %635 = vmatprep.subr.mxu0 %v338
    %636 = vmatpush1.msra.mxu0 %v337
    %637 = vmatprep.subr.mxu0 %v340
    %638 = vmatpush1.msra.mxu0 %v339
    %639 = vmatprep.subr.mxu0 %v342
    %640 = vmatpush1.msra.mxu0 %v341
    %641 = vmatprep.subr.mxu0 %v344
    %642 = vmatpush1.msra.mxu0 %v343
    %643 = vmatprep.mubr.f32.mxu0 %v578
    %644 = vmatmul.mubr.f32.gmra.mrb[0].mxu0 %v559
    %v645 = vpop.f32.mrb[0].mxu0
    %v646 = vadd.f32 0.0, %v645
    %v647 = vpop.f32.mrb[0].mxu0
    %v648 = vadd.f32 0.0, %v647
    %649 = vdwg.mxu0
    %v650 = vrot.slane %v254, 6
    %v652 = vadd.f32 %v646, %v650
    %v653 = vadd.f32 %v648, %v425
    %v654 = vxor.u32 %v652, 2147483648
    %v655 = vmul.f32 %v654, 1.442695
    %v656 = vpow.pop %v655
    %v657 = vadd.f32 %v656, 1.0
    %v658 = vrcp.pop %v657
    %v659 = vmul.f32 1.0, %v658
    %v660 = vmul.f32 %v659, 2.0
    %v661 = vsub.f32 %v660, 1.0
    %662 = vrot.lane.b32.xlu0 %v661, 64
    %v663 = vpop.permute.xlu0 %662
    %v664 = vmul.f32 %v659, %v663
    %665 = vrot.lane.b32.xlu0 %v659, 96
    %v666 = vpop.permute.xlu0 %665
    %v667 = vmul.f32 %v666, %v555
    %v668 = vadd.f32 %v664, %v667
    %669 = vrot.lane.b32.xlu0 %v659, 32
    %v670 = vpop.permute.xlu0 %669
    %v671 = vtanh.pop %v668
    %v672 = vmul.f32 %v670, %v671
    %v673 = vxor.u32 %v653, 2147483648
    %v674 = vmul.f32 %v673, 1.442695
    %v675 = vpow.pop %v674
    %v676 = vadd.f32 %v675, 1.0
    %v677 = vrcp.pop %v676
    %v678 = vmul.f32 1.0, %v677
    %v679 = vmul.f32 %v678, 2.0
    %v680 = vsub.f32 %v679, 1.0
    %681 = vrot.lane.b32.xlu0 %v680, 64
    %v682 = vpop.permute.xlu0 %681
    %v683 = vmul.f32 %v678, %v682
    %684 = vrot.lane.b32.xlu0 %v678, 96
    %v685 = vpop.permute.xlu0 %684
    %v686 = vmul.f32 %v685, %v574
    %v687 = vadd.f32 %v683, %v686
    %688 = vrot.lane.b32.xlu0 %v678, 32
    %v689 = vpop.permute.xlu0 %688
    %v690 = vtanh.pop %v687
    %v691 = vmul.f32 %v689, %v690
    %692 = vmatprep.subr.mxu0 %v282
    %693 = vmatpush1.msra.mxu0 %v281
    %694 = vmatprep.subr.mxu0 %v284
    %695 = vmatpush1.msra.mxu0 %v283
    %696 = vmatprep.subr.mxu0 %v286
    %697 = vmatpush1.msra.mxu0 %v285
    %698 = vmatprep.subr.mxu0 %v288
    %699 = vmatpush1.msra.mxu0 %v287
    %700 = vmatprep.subr.mxu0 %v290
    %701 = vmatpush1.msra.mxu0 %v289
    %702 = vmatprep.subr.mxu0 %v292
    %703 = vmatpush1.msra.mxu0 %v291
    %704 = vmatprep.subr.mxu0 %v294
    %705 = vmatpush1.msra.mxu0 %v293
    %706 = vmatprep.subr.mxu0 %v296
    %707 = vmatpush1.msra.mxu0 %v295
    %708 = vmatprep.subr.mxu0 %v298
    %709 = vmatpush1.msra.mxu0 %v297
    %710 = vmatprep.subr.mxu0 %v300
    %711 = vmatpush1.msra.mxu0 %v299
    %712 = vmatprep.subr.mxu0 %v302
    %713 = vmatpush1.msra.mxu0 %v301
    %714 = vmatprep.subr.mxu0 %v304
    %715 = vmatpush1.msra.mxu0 %v303
    %716 = vmatprep.subr.mxu0 %v306
    %717 = vmatpush1.msra.mxu0 %v305
    %718 = vmatprep.subr.mxu0 %v308
    %719 = vmatpush1.msra.mxu0 %v307
    %720 = vmatprep.subr.mxu0 %v310
    %721 = vmatpush1.msra.mxu0 %v309
    %722 = vmatprep.subr.mxu0 %v312
    %723 = vmatpush1.msra.mxu0 %v311
    %724 = vmatprep.subr.mxu0 %v314
    %725 = vmatpush1.msra.mxu0 %v313
    %726 = vmatprep.subr.mxu0 %v316
    %727 = vmatpush1.msra.mxu0 %v315
    %728 = vmatprep.subr.mxu0 %v318
    %729 = vmatpush1.msra.mxu0 %v317
    %730 = vmatprep.subr.mxu0 %v320
    %731 = vmatpush1.msra.mxu0 %v319
    %732 = vmatprep.subr.mxu0 %v322
    %733 = vmatpush1.msra.mxu0 %v321
    %734 = vmatprep.subr.mxu0 %v324
    %735 = vmatpush1.msra.mxu0 %v323
    %736 = vmatprep.subr.mxu0 %v326
    %737 = vmatpush1.msra.mxu0 %v325
    %738 = vmatprep.subr.mxu0 %v328
    %739 = vmatpush1.msra.mxu0 %v327
    %740 = vmatprep.subr.mxu0 %v330
    %741 = vmatpush1.msra.mxu0 %v329
    %742 = vmatprep.subr.mxu0 %v332
    %743 = vmatpush1.msra.mxu0 %v331
    %744 = vmatprep.subr.mxu0 %v334
    %745 = vmatpush1.msra.mxu0 %v333
    %746 = vmatprep.subr.mxu0 %v336
    %747 = vmatpush1.msra.mxu0 %v335
    %748 = vmatprep.subr.mxu0 %v338
    %749 = vmatpush1.msra.mxu0 %v337
    %750 = vmatprep.subr.mxu0 %v340
    %751 = vmatpush1.msra.mxu0 %v339
    %752 = vmatprep.subr.mxu0 %v342
    %753 = vmatpush1.msra.mxu0 %v341
    %754 = vmatprep.subr.mxu0 %v344
    %755 = vmatpush1.msra.mxu0 %v343
    %756 = vmatprep.mubr.f32.mxu0 %v691
    %757 = vmatmul.mubr.f32.gmra.mrb[0].mxu0 %v672
    %v758 = vpop.f32.mrb[0].mxu0
    %v759 = vadd.f32 0.0, %v758
    %v760 = vpop.f32.mrb[0].mxu0
    %v761 = vadd.f32 0.0, %v760
    %762 = vdwg.mxu0
    %v763 = vadd.f32 %v759, %v259
    %v764 = vadd.f32 %v761, %v425
    %v765 = vxor.u32 %v763, 2147483648
    %v766 = vmul.f32 %v765, 1.442695
    %v767 = vpow.pop %v766
    %v768 = vadd.f32 %v767, 1.0
    %v769 = vrcp.pop %v768
    %v770 = vmul.f32 1.0, %v769
    %v771 = vmul.f32 %v770, 2.0
    %v772 = vsub.f32 %v771, 1.0
    %773 = vrot.lane.b32.xlu0 %v772, 64
    %v774 = vpop.permute.xlu0 %773
    %v775 = vmul.f32 %v770, %v774
    %776 = vrot.lane.b32.xlu0 %v770, 96
    %v777 = vpop.permute.xlu0 %776
    %v778 = vmul.f32 %v777, %v668
    %v779 = vadd.f32 %v775, %v778
    %780 = vrot.lane.b32.xlu0 %v770, 32
    %v781 = vpop.permute.xlu0 %780
    %v782 = vtanh.pop %v779
    %v783 = vmul.f32 %v781, %v782
    %v784 = vxor.u32 %v764, 2147483648
    %v785 = vmul.f32 %v784, 1.442695
    %v786 = vpow.pop %v785
    %v787 = vadd.f32 %v786, 1.0
    %v788 = vrcp.pop %v787
    %v789 = vmul.f32 1.0, %v788
    %v790 = vmul.f32 %v789, 2.0
    %v791 = vsub.f32 %v790, 1.0
    %792 = vrot.lane.b32.xlu0 %v791, 64
    %v793 = vpop.permute.xlu0 %792
    %v794 = vmul.f32 %v789, %v793
    %795 = vrot.lane.b32.xlu0 %v789, 96
    %v796 = vpop.permute.xlu0 %795
    %v797 = vmul.f32 %v796, %v687
    %v798 = vadd.f32 %v794, %v797
    %799 = vrot.lane.b32.xlu0 %v789, 32
    %v800 = vpop.permute.xlu0 %799
    %v801 = vtanh.pop %v798
    %v802 = vmul.f32 %v800, %v801
    %803 = vmatprep.subr.mxu0 %v282
    %804 = vmatpush1.msra.mxu0 %v281
    %805 = vmatprep.subr.mxu0 %v284
    %806 = vmatpush1.msra.mxu0 %v283
    %807 = vmatprep.subr.mxu0 %v286
    %808 = vmatpush1.msra.mxu0 %v285
    %809 = vmatprep.subr.mxu0 %v288
    %810 = vmatpush1.msra.mxu0 %v287
    %811 = vmatprep.subr.mxu0 %v290
    %812 = vmatpush1.msra.mxu0 %v289
    %813 = vmatprep.subr.mxu0 %v292
    %814 = vmatpush1.msra.mxu0 %v291
    %815 = vmatprep.subr.mxu0 %v294
    %816 = vmatpush1.msra.mxu0 %v293
    %817 = vmatprep.subr.mxu0 %v296
    %818 = vmatpush1.msra.mxu0 %v295
    %819 = vmatprep.subr.mxu0 %v298
    %820 = vmatpush1.msra.mxu0 %v297
    %821 = vmatprep.subr.mxu0 %v300
    %822 = vmatpush1.msra.mxu0 %v299
    %823 = vmatprep.subr.mxu0 %v302
    %824 = vmatpush1.msra.mxu0 %v301
    %825 = vmatprep.subr.mxu0 %v304
    %826 = vmatpush1.msra.mxu0 %v303
    %827 = vmatprep.subr.mxu0 %v306
    %828 = vmatpush1.msra.mxu0 %v305
    %829 = vmatprep.subr.mxu0 %v308
    %830 = vmatpush1.msra.mxu0 %v307
    %831 = vmatprep.subr.mxu0 %v310
    %832 = vmatpush1.msra.mxu0 %v309
    %833 = vmatprep.subr.mxu0 %v312
    %834 = vmatpush1.msra.mxu0 %v311
    %835 = vmatprep.subr.mxu0 %v314
    %836 = vmatpush1.msra.mxu0 %v313
    %837 = vmatprep.subr.mxu0 %v316
    %838 = vmatpush1.msra.mxu0 %v315
    %839 = vmatprep.subr.mxu0 %v318
    %840 = vmatpush1.msra.mxu0 %v317
    %841 = vmatprep.subr.mxu0 %v320
    %842 = vmatpush1.msra.mxu0 %v319
    %843 = vmatprep.subr.mxu0 %v322
    %844 = vmatpush1.msra.mxu0 %v321
    %845 = vmatprep.subr.mxu0 %v324
    %846 = vmatpush1.msra.mxu0 %v323
    %847 = vmatprep.subr.mxu0 %v326
    %848 = vmatpush1.msra.mxu0 %v325
    %849 = vmatprep.subr.mxu0 %v328
    %850 = vmatpush1.msra.mxu0 %v327
    %851 = vmatprep.subr.mxu0 %v330
    %852 = vmatpush1.msra.mxu0 %v329
    %853 = vmatprep.subr.mxu0 %v332
    %854 = vmatpush1.msra.mxu0 %v331
    %855 = vmatprep.subr.mxu0 %v334
    %856 = vmatpush1.msra.mxu0 %v333
    %857 = vmatprep.subr.mxu0 %v336
    %858 = vmatpush1.msra.mxu0 %v335
    %859 = vmatprep.subr.mxu0 %v338
    %860 = vmatpush1.msra.mxu0 %v337
    %861 = vmatprep.subr.mxu0 %v340
    %862 = vmatpush1.msra.mxu0 %v339
    %863 = vmatprep.subr.mxu0 %v342
    %864 = vmatpush1.msra.mxu0 %v341
    %865 = vmatprep.subr.mxu0 %v344
    %866 = vmatpush1.msra.mxu0 %v343
    %867 = vmatprep.mubr.f32.mxu0 %v802
    %868 = vmatmul.mubr.f32.gmra.mrb[0].mxu0 %v783
    %v869 = vpop.f32.mrb[0].mxu0
    %v870 = vadd.f32 0.0, %v869
    %v871 = vpop.f32.mrb[0].mxu0
    %v872 = vadd.f32 0.0, %v871
    %873 = vdwg.mxu0
    %v875 = vrot.slane %v259, 2
    %v877 = vadd.f32 %v870, %v875
    %v878 = vadd.f32 %v872, %v425
    %v879 = vxor.u32 %v877, 2147483648
    %v880 = vmul.f32 %v879, 1.442695
    %v881 = vpow.pop %v880
    %v882 = vadd.f32 %v881, 1.0
    %v883 = vrcp.pop %v882
    %v884 = vmul.f32 1.0, %v883
    %v885 = vmul.f32 %v884, 2.0
    %v886 = vsub.f32 %v885, 1.0
    %887 = vrot.lane.b32.xlu0 %v886, 64
    %v888 = vpop.permute.xlu0 %887
    %v889 = vmul.f32 %v884, %v888
    %890 = vrot.lane.b32.xlu0 %v884, 96
    %v891 = vpop.permute.xlu0 %890
    %v892 = vmul.f32 %v891, %v779
    %v893 = vadd.f32 %v889, %v892
    %894 = vrot.lane.b32.xlu0 %v884, 32
    %v895 = vpop.permute.xlu0 %894
    %v896 = vtanh.pop %v893
    %v897 = vmul.f32 %v895, %v896
    %v898 = vxor.u32 %v878, 2147483648
    %v899 = vmul.f32 %v898, 1.442695
    %v900 = vpow.pop %v899
    %v901 = vadd.f32 %v900, 1.0
    %v902 = vrcp.pop %v901
    %v903 = vmul.f32 1.0, %v902
    %v904 = vmul.f32 %v903, 2.0
    %v905 = vsub.f32 %v904, 1.0
    %906 = vrot.lane.b32.xlu0 %v905, 64
    %v907 = vpop.permute.xlu0 %906
    %v908 = vmul.f32 %v903, %v907
    %909 = vrot.lane.b32.xlu0 %v903, 96
    %v910 = vpop.permute.xlu0 %909
    %v911 = vmul.f32 %v910, %v798
    %v912 = vadd.f32 %v908, %v911
    %913 = vrot.lane.b32.xlu0 %v903, 32
    %v914 = vpop.permute.xlu0 %913
    %v915 = vtanh.pop %v912
    %v916 = vmul.f32 %v914, %v915
    %917 = vmatprep.subr.mxu0 %v282
    %918 = vmatpush1.msra.mxu0 %v281
    %919 = vmatprep.subr.mxu0 %v284
    %920 = vmatpush1.msra.mxu0 %v283
    %921 = vmatprep.subr.mxu0 %v286
    %922 = vmatpush1.msra.mxu0 %v285
    %923 = vmatprep.subr.mxu0 %v288
    %924 = vmatpush1.msra.mxu0 %v287
    %925 = vmatprep.subr.mxu0 %v290
    %926 = vmatpush1.msra.mxu0 %v289
    %927 = vmatprep.subr.mxu0 %v292
    %928 = vmatpush1.msra.mxu0 %v291
    %929 = vmatprep.subr.mxu0 %v294
    %930 = vmatpush1.msra.mxu0 %v293
    %931 = vmatprep.subr.mxu0 %v296
    %932 = vmatpush1.msra.mxu0 %v295
    %933 = vmatprep.subr.mxu0 %v298
    %934 = vmatpush1.msra.mxu0 %v297
    %935 = vmatprep.subr.mxu0 %v300
    %936 = vmatpush1.msra.mxu0 %v299
    %937 = vmatprep.subr.mxu0 %v302
    %938 = vmatpush1.msra.mxu0 %v301
    %939 = vmatprep.subr.mxu0 %v304
    %940 = vmatpush1.msra.mxu0 %v303
    %941 = vmatprep.subr.mxu0 %v306
    %942 = vmatpush1.msra.mxu0 %v305
    %943 = vmatprep.subr.mxu0 %v308
    %944 = vmatpush1.msra.mxu0 %v307
    %945 = vmatprep.subr.mxu0 %v310
    %946 = vmatpush1.msra.mxu0 %v309
    %947 = vmatprep.subr.mxu0 %v312
    %948 = vmatpush1.msra.mxu0 %v311
    %949 = vmatprep.subr.mxu0 %v314
    %950 = vmatpush1.msra.mxu0 %v313
    %951 = vmatprep.subr.mxu0 %v316
    %952 = vmatpush1.msra.mxu0 %v315
    %953 = vmatprep.subr.mxu0 %v318
    %954 = vmatpush1.msra.mxu0 %v317
    %955 = vmatprep.subr.mxu0 %v320
    %956 = vmatpush1.msra.mxu0 %v319
    %957 = vmatprep.subr.mxu0 %v322
    %958 = vmatpush1.msra.mxu0 %v321
    %959 = vmatprep.subr.mxu0 %v324
    %960 = vmatpush1.msra.mxu0 %v323
    %961 = vmatprep.subr.mxu0 %v326
    %962 = vmatpush1.msra.mxu0 %v325
    %963 = vmatprep.subr.mxu0 %v328
    %964 = vmatpush1.msra.mxu0 %v327
    %965 = vmatprep.subr.mxu0 %v330
    %966 = vmatpush1.msra.mxu0 %v329
    %967 = vmatprep.subr.mxu0 %v332
    %968 = vmatpush1.msra.mxu0 %v331
    %969 = vmatprep.subr.mxu0 %v334
    %970 = vmatpush1.msra.mxu0 %v333
    %971 = vmatprep.subr.mxu0 %v336
    %972 = vmatpush1.msra.mxu0 %v335
    %973 = vmatprep.subr.mxu0 %v338
    %974 = vmatpush1.msra.mxu0 %v337
    %975 = vmatprep.subr.mxu0 %v340
    %976 = vmatpush1.msra.mxu0 %v339
    %977 = vmatprep.subr.mxu0 %v342
    %978 = vmatpush1.msra.mxu0 %v341
    %979 = vmatprep.subr.mxu0 %v344
    %980 = vmatpush1.msra.mxu0 %v343
    %981 = vmatprep.mubr.f32.mxu0 %v916
    %982 = vmatmul.mubr.f32.gmra.mrb[0].mxu0 %v897
    %v983 = vpop.f32.mrb[0].mxu0
    %v984 = vadd.f32 0.0, %v983
    %v985 = vpop.f32.mrb[0].mxu0
    %v986 = vadd.f32 0.0, %v985
    %987 = vdwg.mxu0
    %v988 = vrot.slane %v259, 4
    %v990 = vadd.f32 %v984, %v988
    %v991 = vadd.f32 %v986, %v425
    %v992 = vxor.u32 %v990, 2147483648
    %v993 = vmul.f32 %v992, 1.442695
    %v994 = vpow.pop %v993
    %v995 = vadd.f32 %v994, 1.0
    %v996 = vrcp.pop %v995
    %v997 = vmul.f32 1.0, %v996
    %v998 = vmul.f32 %v997, 2.0
    %v999 = vsub.f32 %v998, 1.0
    %1000 = vrot.lane.b32.xlu0 %v999, 64
    %v1001 = vpop.permute.xlu0 %1000
    %v1002 = vmul.f32 %v997, %v1001
    %1003 = vrot.lane.b32.xlu0 %v997, 96
    %v1004 = vpop.permute.xlu0 %1003
    %v1005 = vmul.f32 %v1004, %v893
    %v1006 = vadd.f32 %v1002, %v1005
    %1007 = vrot.lane.b32.xlu0 %v997, 32
    %v1008 = vpop.permute.xlu0 %1007
    %v1009 = vtanh.pop %v1006
    %v1010 = vmul.f32 %v1008, %v1009
    %v1011 = vxor.u32 %v991, 2147483648
    %v1012 = vmul.f32 %v1011, 1.442695
    %v1013 = vpow.pop %v1012
    %v1014 = vadd.f32 %v1013, 1.0
    %v1015 = vrcp.pop %v1014
    %v1016 = vmul.f32 1.0, %v1015
    %v1017 = vmul.f32 %v1016, 2.0
    %v1018 = vsub.f32 %v1017, 1.0
    %1019 = vrot.lane.b32.xlu0 %v1018, 64
    %v1020 = vpop.permute.xlu0 %1019
    %v1021 = vmul.f32 %v1016, %v1020
    %1022 = vrot.lane.b32.xlu0 %v1016, 96
    %v1023 = vpop.permute.xlu0 %1022
    %v1024 = vmul.f32 %v1023, %v912
    %v1025 = vadd.f32 %v1021, %v1024
    %1026 = vrot.lane.b32.xlu0 %v1016, 32
    %v1027 = vpop.permute.xlu0 %1026
    %v1028 = vtanh.pop %v1025
    %v1029 = vmul.f32 %v1027, %v1028
    %1030 = vmatprep.subr.mxu0 %v282
    %1031 = vmatpush1.msra.mxu0 %v281
    %1032 = vmatprep.subr.mxu0 %v284
    %1033 = vmatpush1.msra.mxu0 %v283
    %1034 = vmatprep.subr.mxu0 %v286
    %1035 = vmatpush1.msra.mxu0 %v285
    %1036 = vmatprep.subr.mxu0 %v288
    %1037 = vmatpush1.msra.mxu0 %v287
    %1038 = vmatprep.subr.mxu0 %v290
    %1039 = vmatpush1.msra.mxu0 %v289
    %1040 = vmatprep.subr.mxu0 %v292
    %1041 = vmatpush1.msra.mxu0 %v291
    %1042 = vmatprep.subr.mxu0 %v294
    %1043 = vmatpush1.msra.mxu0 %v293
    %1044 = vmatprep.subr.mxu0 %v296
    %1045 = vmatpush1.msra.mxu0 %v295
    %1046 = vmatprep.subr.mxu0 %v298
    %1047 = vmatpush1.msra.mxu0 %v297
    %1048 = vmatprep.subr.mxu0 %v300
    %1049 = vmatpush1.msra.mxu0 %v299
    %1050 = vmatprep.subr.mxu0 %v302
    %1051 = vmatpush1.msra.mxu0 %v301
    %1052 = vmatprep.subr.mxu0 %v304
    %1053 = vmatpush1.msra.mxu0 %v303
    %1054 = vmatprep.subr.mxu0 %v306
    %1055 = vmatpush1.msra.mxu0 %v305
    %1056 = vmatprep.subr.mxu0 %v308
    %1057 = vmatpush1.msra.mxu0 %v307
    %1058 = vmatprep.subr.mxu0 %v310
    %1059 = vmatpush1.msra.mxu0 %v309
    %1060 = vmatprep.subr.mxu0 %v312
    %1061 = vmatpush1.msra.mxu0 %v311
    %1062 = vmatprep.subr.mxu0 %v314
    %1063 = vmatpush1.msra.mxu0 %v313
    %1064 = vmatprep.subr.mxu0 %v316
    %1065 = vmatpush1.msra.mxu0 %v315
    %1066 = vmatprep.subr.mxu0 %v318
    %1067 = vmatpush1.msra.mxu0 %v317
    %1068 = vmatprep.subr.mxu0 %v320
    %1069 = vmatpush1.msra.mxu0 %v319
    %1070 = vmatprep.subr.mxu0 %v322
    %1071 = vmatpush1.msra.mxu0 %v321
    %1072 = vmatprep.subr.mxu0 %v324
    %1073 = vmatpush1.msra.mxu0 %v323
    %1074 = vmatprep.subr.mxu0 %v326
    %1075 = vmatpush1.msra.mxu0 %v325
    %1076 = vmatprep.subr.mxu0 %v328
    %1077 = vmatpush1.msra.mxu0 %v327
    %1078 = vmatprep.subr.mxu0 %v330
    %1079 = vmatpush1.msra.mxu0 %v329
    %1080 = vmatprep.subr.mxu0 %v332
    %1081 = vmatpush1.msra.mxu0 %v331
    %1082 = vmatprep.subr.mxu0 %v334
    %1083 = vmatpush1.msra.mxu0 %v333
    %1084 = vmatprep.subr.mxu0 %v336
    %1085 = vmatpush1.msra.mxu0 %v335
    %1086 = vmatprep.subr.mxu0 %v338
    %1087 = vmatpush1.msra.mxu0 %v337
    %1088 = vmatprep.subr.mxu0 %v340
    %1089 = vmatpush1.msra.mxu0 %v339
    %1090 = vmatprep.subr.mxu0 %v342
    %1091 = vmatpush1.msra.mxu0 %v341
    %1092 = vmatprep.subr.mxu0 %v344
    %1093 = vmatpush1.msra.mxu0 %v343
    %1094 = vmatprep.mubr.f32.mxu0 %v1029
    %1095 = vmatmul.mubr.f32.gmra.mrb[0].mxu0 %v1010
    %v1096 = vpop.f32.mrb[0].mxu0
    %v1097 = vadd.f32 0.0, %v1096
    %v1098 = vpop.f32.mrb[0].mxu0
    %v1099 = vadd.f32 0.0, %v1098
    %1100 = vdwg.mxu0
    %v1101 = vrot.slane %v259, 6
    %v1103 = vadd.f32 %v1097, %v1101
    %v1104 = vadd.f32 %v1099, %v425
    %v1105 = vxor.u32 %v1103, 2147483648
    %v1106 = vmul.f32 %v1105, 1.442695
    %v1107 = vpow.pop %v1106
    %v1108 = vadd.f32 %v1107, 1.0
    %v1109 = vrcp.pop %v1108
    %v1110 = vmul.f32 1.0, %v1109
    %v1111 = vmul.f32 %v1110, 2.0
    %v1112 = vsub.f32 %v1111, 1.0
    %1113 = vrot.lane.b32.xlu0 %v1112, 64
    %v1114 = vpop.permute.xlu0 %1113
    %v1115 = vmul.f32 %v1110, %v1114
    %1116 = vrot.lane.b32.xlu0 %v1110, 96
    %v1117 = vpop.permute.xlu0 %1116
    %v1118 = vmul.f32 %v1117, %v1006
    %v1119 = vadd.f32 %v1115, %v1118
    %1120 = vrot.lane.b32.xlu0 %v1110, 32
    %v1121 = vpop.permute.xlu0 %1120
    %v1122 = vtanh.pop %v1119
    %v1123 = vmul.f32 %v1121, %v1122
    %v1124 = vxor.u32 %v1104, 2147483648
    %v1125 = vmul.f32 %v1124, 1.442695
    %v1126 = vpow.pop %v1125
    %v1127 = vadd.f32 %v1126, 1.0
    %v1128 = vrcp.pop %v1127
    %v1129 = vmul.f32 1.0, %v1128
    %v1130 = vmul.f32 %v1129, 2.0
    %v1131 = vsub.f32 %v1130, 1.0
    %1132 = vrot.lane.b32.xlu0 %v1131, 64
    %v1133 = vpop.permute.xlu0 %1132
    %v1134 = vmul.f32 %v1129, %v1133
    %1135 = vrot.lane.b32.xlu0 %v1129, 96
    %v1136 = vpop.permute.xlu0 %1135
    %v1137 = vmul.f32 %v1136, %v1025
    %v1138 = vadd.f32 %v1134, %v1137
    %1139 = vrot.lane.b32.xlu0 %v1129, 32
    %v1140 = vpop.permute.xlu0 %1139
    %v1141 = vtanh.pop %v1138
    %v1142 = vmul.f32 %v1140, %v1141
    %1143 = vmatprep.subr.mxu0 0.0
    %1144 = vmatpush1.msra.mxu0 %v282
    %1145 = vmatprep.subr.mxu0 0.0
    %1146 = vmatpush1.msra.mxu0 %v284
    %1147 = vmatprep.subr.mxu0 0.0
    %1148 = vmatpush1.msra.mxu0 %v286
    %1149 = vmatprep.subr.mxu0 0.0
    %1150 = vmatpush1.msra.mxu0 %v288
    %1151 = vmatprep.subr.mxu0 0.0
    %1152 = vmatpush1.msra.mxu0 %v290
    %1153 = vmatprep.subr.mxu0 0.0
    %1154 = vmatpush1.msra.mxu0 %v292
    %1155 = vmatprep.subr.mxu0 0.0
    %1156 = vmatpush1.msra.mxu0 %v294
    %1157 = vmatprep.subr.mxu0 0.0
    %1158 = vmatpush1.msra.mxu0 %v296
    %1159 = vmatprep.subr.mxu0 0.0
    %1160 = vmatpush1.msra.mxu0 %v298
    %1161 = vmatprep.subr.mxu0 0.0
    %1162 = vmatpush1.msra.mxu0 %v300
    %1163 = vmatprep.subr.mxu0 0.0
    %1164 = vmatpush1.msra.mxu0 %v302
    %1165 = vmatprep.subr.mxu0 0.0
    %1166 = vmatpush1.msra.mxu0 %v304
    %1167 = vmatprep.subr.mxu0 0.0
    %1168 = vmatpush1.msra.mxu0 %v306
    %1169 = vmatprep.subr.mxu0 0.0
    %1170 = vmatpush1.msra.mxu0 %v308
    %1171 = vmatprep.subr.mxu0 0.0
    %1172 = vmatpush1.msra.mxu0 %v310
    %1173 = vmatprep.subr.mxu0 0.0
    %1174 = vmatpush1.msra.mxu0 %v312
    %1175 = vmatprep.subr.mxu0 0.0
    %1176 = vmatpush1.msra.mxu0 %v314
    %1177 = vmatprep.subr.mxu0 0.0
    %1178 = vmatpush1.msra.mxu0 %v316
    %1179 = vmatprep.subr.mxu0 0.0
    %1180 = vmatpush1.msra.mxu0 %v318
    %1181 = vmatprep.subr.mxu0 0.0
    %1182 = vmatpush1.msra.mxu0 %v320
    %1183 = vmatprep.subr.mxu0 0.0
    %1184 = vmatpush1.msra.mxu0 %v322
    %1185 = vmatprep.subr.mxu0 0.0
    %1186 = vmatpush1.msra.mxu0 %v324
    %1187 = vmatprep.subr.mxu0 0.0
    %1188 = vmatpush1.msra.mxu0 %v326
    %1189 = vmatprep.subr.mxu0 0.0
    %1190 = vmatpush1.msra.mxu0 %v328
    %1191 = vmatprep.subr.mxu0 0.0
    %1192 = vmatpush1.msra.mxu0 %v330
    %1193 = vmatprep.subr.mxu0 0.0
    %1194 = vmatpush1.msra.mxu0 %v332
    %1195 = vmatprep.subr.mxu0 0.0
    %1196 = vmatpush1.msra.mxu0 %v334
    %1197 = vmatprep.subr.mxu0 0.0
    %1198 = vmatpush1.msra.mxu0 %v336
    %1199 = vmatprep.subr.mxu0 0.0
    %1200 = vmatpush1.msra.mxu0 %v338
    %1201 = vmatprep.subr.mxu0 0.0
    %1202 = vmatpush1.msra.mxu0 %v340
    %1203 = vmatprep.subr.mxu0 0.0
    %1204 = vmatpush1.msra.mxu0 %v342
    %1205 = vmatprep.subr.mxu0 0.0
    %1206 = vmatpush1.msra.mxu0 %v344
    %1207 = vmatprep.mubr.f32.mxu0 %v1142
    %1208 = vmatmul.mubr.f32.gmra.mrb[0].mxu0 %v1123
    %v1209 = vpop.f32.mrb[0].mxu0
    %v1210 = vadd.f32 %v425, %v1209
    %v1211 = vpop.f32.mrb[0].mxu0
    %1212 = vdwg.mxu0
    %v1213 = vxor.u32 %v1210, 2147483648
    %v1214 = vmul.f32 %v1213, 1.442695
    %v1215 = vpow.pop %v1214
    %v1216 = vadd.f32 %v1215, 1.0
    %v1217 = vrcp.pop %v1216
    %v1218 = vmul.f32 1.0, %v1217
    %v1219 = vmul.f32 %v1218, 2.0
    %v1220 = vsub.f32 %v1219, 1.0
    %1221 = vrot.lane.b32.xlu0 %v1220, 64
    %v1222 = vpop.permute.xlu0 %1221
    %v1223 = vmul.f32 %v1218, %v1222
    %1224 = vrot.lane.b32.xlu0 %v1218, 96
    %v1225 = vpop.permute.xlu0 %1224
    %v1226 = vmul.f32 %v1225, %v1138
    %v1227 = vadd.f32 %v1223, %v1226
    %1228 = vrot.lane.b32.xlu0 %v1218, 32
    %v1229 = vpop.permute.xlu0 %1228
    %v1230 = vtanh.pop %v1227
    %v1231 = vmul.f32 %v1229, %v1230
    %v1232 = vld [vmem:[%s5] sm:$0xff]
    %v1233 = vld [vmem:[%s5 + $0x8] sm:$0xff]
    %v1234 = vld [vmem:[%s5 + $0x10] sm:$0xff]
    %v1235 = vld [vmem:[%s5 + $0x18] sm:$0xff]
    %v1236 = vld [vmem:[%s5 + $0x20] sm:$0xff]
    %v1237 = vld [vmem:[%s5 + $0x28] sm:$0xff]
    %v1238 = vld [vmem:[%s5 + $0x30] sm:$0xff]
    %v1239 = vld [vmem:[%s5 + $0x38] sm:$0xff]
    %v1240 = vld [vmem:[%s5 + $0x40] sm:$0xff]
    %v1241 = vld [vmem:[%s5 + $0x48] sm:$0xff]
    %v1242 = vld [vmem:[%s5 + $0x50] sm:$0xff]
    %v1243 = vld [vmem:[%s5 + $0x58] sm:$0xff]
    %v1244 = vld [vmem:[%s5 + $0x60] sm:$0xff]
    %v1245 = vld [vmem:[%s5 + $0x68] sm:$0xff]
    %v1246 = vld [vmem:[%s5 + $0x70] sm:$0xff]
    %v1247 = vld [vmem:[%s5 + $0x78] sm:$0xff]
    %v1248 = vld [vmem:[%s6] sm:$0x1]
    %v1250 = vlaneseq
    %v1251 = vshrl.u32 %v1250, 7
    %v1252 = vsub.s32 0, %v1251
    %v1253 = vrot.slane %v1248, %v1252
    %1255 = vmatprep.subr.mxu0 0.0
    %1256 = vmatpush1.msra.mxu0 %v1232
    %1257 = vmatprep.subr.mxu0 0.0
    %1258 = vmatpush1.msra.mxu0 %v1233
    %1259 = vmatprep.subr.mxu0 0.0
    %1260 = vmatpush1.msra.mxu0 %v1234
    %1261 = vmatprep.subr.mxu0 0.0
    %1262 = vmatpush1.msra.mxu0 %v1235
    %1263 = vmatprep.subr.mxu0 0.0
    %1264 = vmatpush1.msra.mxu0 %v1236
    %1265 = vmatprep.subr.mxu0 0.0
    %1266 = vmatpush1.msra.mxu0 %v1237
    %1267 = vmatprep.subr.mxu0 0.0
    %1268 = vmatpush1.msra.mxu0 %v1238
    %1269 = vmatprep.subr.mxu0 0.0
    %1270 = vmatpush1.msra.mxu0 %v1239
    %1271 = vmatprep.subr.mxu0 0.0
    %1272 = vmatpush1.msra.mxu0 %v1240
    %1273 = vmatprep.subr.mxu0 0.0
    %1274 = vmatpush1.msra.mxu0 %v1241
    %1275 = vmatprep.subr.mxu0 0.0
    %1276 = vmatpush1.msra.mxu0 %v1242
    %1277 = vmatprep.subr.mxu0 0.0
    %1278 = vmatpush1.msra.mxu0 %v1243
    %1279 = vmatprep.subr.mxu0 0.0
    %1280 = vmatpush1.msra.mxu0 %v1244
    %1281 = vmatprep.subr.mxu0 0.0
    %1282 = vmatpush1.msra.mxu0 %v1245
    %1283 = vmatprep.subr.mxu0 0.0
    %1284 = vmatpush1.msra.mxu0 %v1246
    %1285 = vmatprep.subr.mxu0 0.0
    %1286 = vmatpush1.msra.mxu0 %v1247
    %1287 = vmatprep.subr.mxu0 0.0
    %1288 = vmatpush1.msra.mxu0 0.0
    %1289 = vmatprep.subr.mxu0 0.0
    %1290 = vmatpush1.msra.mxu0 0.0
    %1291 = vmatprep.subr.mxu0 0.0
    %1292 = vmatpush1.msra.mxu0 0.0
    %1293 = vmatprep.subr.mxu0 0.0
    %1294 = vmatpush1.msra.mxu0 0.0
    %1295 = vmatprep.subr.mxu0 0.0
    %1296 = vmatpush1.msra.mxu0 0.0
    %1297 = vmatprep.subr.mxu0 0.0
    %1298 = vmatpush1.msra.mxu0 0.0
    %1299 = vmatprep.subr.mxu0 0.0
    %1300 = vmatpush1.msra.mxu0 0.0
    %1301 = vmatprep.subr.mxu0 0.0
    %1302 = vmatpush1.msra.mxu0 0.0
    %1303 = vmatprep.subr.mxu0 0.0
    %1304 = vmatpush1.msra.mxu0 0.0
    %1305 = vmatprep.subr.mxu0 0.0
    %1306 = vmatpush1.msra.mxu0 0.0
    %1307 = vmatprep.subr.mxu0 0.0
    %1308 = vmatpush1.msra.mxu0 0.0
    %1309 = vmatprep.subr.mxu0 0.0
    %1310 = vmatpush1.msra.mxu0 0.0
    %1311 = vmatprep.subr.mxu0 0.0
    %1312 = vmatpush1.msra.mxu0 0.0
    %1313 = vmatprep.subr.mxu0 0.0
    %1314 = vmatpush1.msra.mxu0 0.0
    %1315 = vmatprep.subr.mxu0 0.0
    %1316 = vmatpush1.msra.mxu0 0.0
    %1317 = vmatprep.subr.mxu0 0.0
    %1318 = vmatpush1.msra.mxu0 0.0
    %1319 = vmatprep.mubr.f32.mxu0 0.0
    %1320 = vmatmul.mubr.f32.gmra.mrb[0].mxu0 %v1231
    %v1321 = vpop.f32.mrb[0].mxu0
    %v1322 = vadd.f32 %v1253, %v1321
    %v1323 = vpop.f32.mrb[0].mxu0
    %1324 = vdwg.mxu0
    %v1325 = vmax.f32 %v1322, 0.0
    %v1326 = vld [vmem:[%s7] sm:$0xff]
    %v1327 = vld [vmem:[%s7 + $0x8] sm:$0xff]
    %v1328 = vld [vmem:[%s7 + $0x10] sm:$0xff]
    %v1329 = vld [vmem:[%s7 + $0x18] sm:$0xff]
    %v1330 = vld [vmem:[%s7 + $0x20] sm:$0xff]
    %v1331 = vld [vmem:[%s7 + $0x28] sm:$0xff]
    %v1332 = vld [vmem:[%s7 + $0x30] sm:$0xff]
    %v1333 = vld [vmem:[%s7 + $0x38] sm:$0xff]
    %v1334 = vld [vmem:[%s7 + $0x40] sm:$0xff]
    %v1335 = vld [vmem:[%s7 + $0x48] sm:$0xff]
    %v1336 = vld [vmem:[%s7 + $0x50] sm:$0xff]
    %v1337 = vld [vmem:[%s7 + $0x58] sm:$0xff]
    %v1338 = vld [vmem:[%s7 + $0x60] sm:$0xff]
    %v1339 = vld [vmem:[%s7 + $0x68] sm:$0xff]
    %v1340 = vld [vmem:[%s7 + $0x70] sm:$0xff]
    %v1341 = vld [vmem:[%s7 + $0x78] sm:$0xff]
    %v1342 = vld [vmem:[%s8] sm:$0x1]
    %v1344 = vlaneseq
    %v1345 = vshrl.u32 %v1344, 7
    %v1346 = vsub.s32 0, %v1345
    %v1347 = vrot.slane %v1342, %v1346
    %1349 = vmatprep.subr.mxu0 0.0
    %1350 = vmatpush1.msra.mxu0 %v1326
    %1351 = vmatprep.subr.mxu0 0.0
    %1352 = vmatpush1.msra.mxu0 %v1327
    %1353 = vmatprep.subr.mxu0 0.0
    %1354 = vmatpush1.msra.mxu0 %v1328
    %1355 = vmatprep.subr.mxu0 0.0
    %1356 = vmatpush1.msra.mxu0 %v1329
    %1357 = vmatprep.subr.mxu0 0.0
    %1358 = vmatpush1.msra.mxu0 %v1330
    %1359 = vmatprep.subr.mxu0 0.0
    %1360 = vmatpush1.msra.mxu0 %v1331
    %1361 = vmatprep.subr.mxu0 0.0
    %1362 = vmatpush1.msra.mxu0 %v1332
    %1363 = vmatprep.subr.mxu0 0.0
    %1364 = vmatpush1.msra.mxu0 %v1333
    %1365 = vmatprep.subr.mxu0 0.0
    %1366 = vmatpush1.msra.mxu0 %v1334
    %1367 = vmatprep.subr.mxu0 0.0
    %1368 = vmatpush1.msra.mxu0 %v1335
    %1369 = vmatprep.subr.mxu0 0.0
    %1370 = vmatpush1.msra.mxu0 %v1336
    %1371 = vmatprep.subr.mxu0 0.0
    %1372 = vmatpush1.msra.mxu0 %v1337
    %1373 = vmatprep.subr.mxu0 0.0
    %1374 = vmatpush1.msra.mxu0 %v1338
    %1375 = vmatprep.subr.mxu0 0.0
    %1376 = vmatpush1.msra.mxu0 %v1339
    %1377 = vmatprep.subr.mxu0 0.0
    %1378 = vmatpush1.msra.mxu0 %v1340
    %1379 = vmatprep.subr.mxu0 0.0
    %1380 = vmatpush1.msra.mxu0 %v1341
    %1381 = vmatprep.subr.mxu0 0.0
    %1382 = vmatpush1.msra.mxu0 0.0
    %1383 = vmatprep.subr.mxu0 0.0
    %1384 = vmatpush1.msra.mxu0 0.0
    %1385 = vmatprep.subr.mxu0 0.0
    %1386 = vmatpush1.msra.mxu0 0.0
    %1387 = vmatprep.subr.mxu0 0.0
    %1388 = vmatpush1.msra.mxu0 0.0
    %1389 = vmatprep.subr.mxu0 0.0
    %1390 = vmatpush1.msra.mxu0 0.0
    %1391 = vmatprep.subr.mxu0 0.0
    %1392 = vmatpush1.msra.mxu0 0.0
    %1393 = vmatprep.subr.mxu0 0.0
    %1394 = vmatpush1.msra.mxu0 0.0
    %1395 = vmatprep.subr.mxu0 0.0
    %1396 = vmatpush1.msra.mxu0 0.0
    %1397 = vmatprep.subr.mxu0 0.0
    %1398 = vmatpush1.msra.mxu0 0.0
    %1399 = vmatprep.subr.mxu0 0.0
    %1400 = vmatpush1.msra.mxu0 0.0
    %1401 = vmatprep.subr.mxu0 0.0
    %1402 = vmatpush1.msra.mxu0 0.0
    %1403 = vmatprep.subr.mxu0 0.0
    %1404 = vmatpush1.msra.mxu0 0.0
    %1405 = vmatprep.subr.mxu0 0.0
    %1406 = vmatpush1.msra.mxu0 0.0
    %1407 = vmatprep.subr.mxu0 0.0
    %1408 = vmatpush1.msra.mxu0 0.0
    %1409 = vmatprep.subr.mxu0 0.0
    %1410 = vmatpush1.msra.mxu0 0.0
    %1411 = vmatprep.subr.mxu0 0.0
    %1412 = vmatpush1.msra.mxu0 0.0
    %1413 = vmatprep.mubr.f32.mxu0 0.0
    %1414 = vmatmul.mubr.f32.gmra.mrb[0].mxu0 %v1325
    %v1415 = vpop.f32.mrb[0].mxu0
    %v1416 = vadd.f32 %v1347, %v1415
    %v1417 = vpop.f32.mrb[0].mxu0
    %1418 = vdwg.mxu0
    %1419 = vst [vmem:[#allocation2] sm:$0x3] %v1416
    // Predicated region
    $region38: #{fwd.1} parent=1 // pred_check
      _
    $region39: #{fwd.1} parent=1 // pred_check_branch
      %1421 = sbr.rel (0) target = $region41
    $region40: #{fwd.1} parent=1 // pred_region
      %s1423 = ssub.s32 32, 32
      %1424 = vsyncadd [#allocation3], %s1423
      %s1426 = sshll.u32 [#allocation2], 4
      %s1427 = int_to_ptr.vmem [resolvable:$true] %s1426
      %1429 = dma.vmem_to_hbm [thread:$0]  %s1427, 32, %s9, [#allocation3]
    $region41: #{fwd.1} parent=1 // pred_fallthru
      _
    // Predicated region
    $region42: #{fwd.1} parent=1 // pred_check
      _
    $region43: #{fwd.1} parent=1 // pred_check_branch
      %1431 = sbr.rel (0) target = $region45
    $region44: #{fwd.1} parent=1 // pred_region
      %1432 = dma.done [#allocation3], 32
    $region45: #{fwd.1} parent=1 // pred_fallthru
      _
    %1433 = vsyncpa [#allocation3], 1

</llo_original>
